<compile_context>
chip_gen: v6e
topology: v6e:2x2x1
jax: 0.10.0
libtpu: 0.0.40
codegen_flags: <defaults>
</compile_context>

<pallas_src>
import jax
import jax.numpy as jnp
from jax import lax
from jax.experimental import pallas as pl
from jax.experimental.pallas import tpu as pltpu

F32 = jnp.float32
BF16 = jnp.bfloat16
BN_EPS = 1e-5
OUT_LANES = 128          # lane-dense output slab width


# ----------------------------------------------------------------------------
# Fused kernel
# ----------------------------------------------------------------------------
def _make_fused_kernel(NL, NN, NC, L, H, HID):
    NLNN = NL * NN
    H4 = 4 * H

    def gate_math(gates, c_prev):
        # full-width (B, 4H) EUP ops, then slice (review: gate micro-opt)
        sig = jax.nn.sigmoid(gates)
        tg = jnp.tanh(gates)
        i = sig[:, 0 * H:1 * H]
        f = sig[:, 1 * H:2 * H]
        o = sig[:, 3 * H:4 * H]
        g = tg[:, 2 * H:3 * H]
        c_new = f * c_prev + i * g
        h_new = o * jnp.tanh(c_new)
        return h_new, c_new

    def full_bn(x, gamma, beta):
        # training-mode BatchNorm1d over all rows (matches reference batch_norm1)
        m = jnp.mean(x, axis=0, keepdims=True)
        d = x - m
        v = jnp.mean(d * d, axis=0, keepdims=True)
        return d * lax.rsqrt(v + BN_EPS) * gamma + beta

    def kernel(cond_ref, opsex_ref, map_ref,
               wih1_ref, whh1_ref, b1_ref,
               wc_ref, bc_ref, g1_ref, be1_ref,
               w2x_ref, w2c_ref, whh2_ref, b2_ref,
               g2_ref, be2_ref,
               w1_ref, bh1_ref, g3_ref, be3_ref,
               wm_ref, bm_ref, wo_ref, bo_ref,
               o_ref):
        # ------------- lstm1: hoisted input projection + recurrence ------------
        # ONE (NC*NLNN, L)@(L, 4H) matmul; the serial chain only has h@whh1.
        gx1 = jnp.dot(cond_ref[...].astype(BF16), wih1_ref[...],
                      preferred_element_type=jnp.float32) + b1_ref[...]
        whh1 = whh1_ref[...]                                   # bf16 (H, 4H)

        # step 0: h == 0, so gates are just the input projection
        h, c = gate_math(gx1[0:NLNN, :], jnp.zeros((NLNN, H), F32))
        for t in range(1, NC):                                 # static unroll (NC small)
            gates = gx1[t * NLNN:(t + 1) * NLNN, :] + jnp.dot(
                h.astype(BF16), whh1, preferred_element_type=jnp.float32)
            h, c = gate_math(gates, c)

        # ------------- condition_mlp + ReLU + batch_norm1 ----------------------
        y = jnp.maximum(
            jnp.dot(h.astype(BF16), wc_ref[...],
                    preferred_element_type=jnp.float32) + bc_ref[...], 0.0)
        cond_feat = full_bn(y, g1_ref[...], be1_ref[...])       # (NLNN, HID) f32

        # ------------- lstm2: hoisted input projection for ALL levels ----------
        gx2 = (jnp.dot(opsex_ref[...].astype(BF16), w2x_ref[...],
                       preferred_element_type=jnp.float32)
               + jnp.dot(cond_feat.astype(BF16), w2c_ref[...],
                         preferred_element_type=jnp.float32)
               + b2_ref[...])                                   # (NLNN, 4H)
        whh2 = whh2_ref[...]                                    # bf16 (H, 4H)

        # Build every child-average gather matrix BEFORE the serial recurrence.
        # Column j corresponds to child node j (mapping value j+1; value 0 is
        # the zero-pad row and contributes nothing).
        node_ids = lax.broadcasted_iota(jnp.int32, (NN, NN), 1) + 1
        gws = []
        for idx in range(NL - 1):
            mp = map_ref[idx]                                   # (NN, 2) int32
            left = mp[:, 0:1]
            right = mp[:, 1:2]
            gws.append(0.5 * ((left == node_ids).astype(F32)
                              + (right == node_ids).astype(F32)))

        # bottom level: h2 == c2 == 0 -> skip the recurrent matmul
        h2, c2 = gate_math(gx2[(NL - 1) * NN:NL * NN, :], jnp.zeros((NN, H), F32))
        for idx in reversed(range(NL - 1)):                     # static unroll (NL small)
            hc = jnp.concatenate([h2, c2], axis=1)              # (NN, 2H)
            hc = jnp.dot(gws[idx], hc, preferred_element_type=jnp.float32)
            h2 = hc[:, 0:H]
            c2 = hc[:, H:2 * H]
            gates = gx2[idx * NN:(idx + 1) * NN, :] + jnp.dot(
                h2.astype(BF16), whh2, preferred_element_type=jnp.float32)
            h2, c2 = gate_math(gates, c2)

        # ------- in-kernel batch_size: leading non-zero operator rows at level 0
        op_row_sum = jnp.sum(opsex_ref[0:NN, 0:4], axis=1, keepdims=True)  # (NN,1)
        idx_col = lax.broadcasted_iota(jnp.int32, (NN, 1), 0).astype(F32)
        cand = jnp.where(op_row_sum == 0.0, idx_col, float(NN))
        bsz = jnp.maximum(jnp.min(cand, axis=0, keepdims=True), 1.0)        # (1,1)
        valid = (idx_col < bsz).astype(F32)                                 # (NN,1)
        inv_n = 1.0 / bsz

        def masked_bn(x, gamma, beta):
            # BatchNorm statistics over only the first batch_size rows, exactly
            # like the reference slicing output[0:batch_size] before batch_norm2.
            m = jnp.sum(x * valid, axis=0, keepdims=True) * inv_n
            d = (x - m) * valid
            v = jnp.sum(d * d, axis=0, keepdims=True) * inv_n
            return (x - m) * lax.rsqrt(v + BN_EPS) * gamma + beta

        # ------- head: bn2 -> mlp2 -> bn3 -> mlp3 -> mlp3 -> out -> sigmoid ----
        t1 = masked_bn(h2, g2_ref[...], be2_ref[...])
        t1 = jnp.maximum(
            jnp.dot(t1.astype(BF16), w1_ref[...],
                    preferred_element_type=jnp.float32) + bh1_ref[...], 0.0)
        t1 = masked_bn(t1, g3_ref[...], be3_ref[...])
        wm = wm_ref[...]
        bm = bm_ref[...]
        t1 = jnp.maximum(
            jnp.dot(t1.astype(BF16), wm, preferred_element_type=jnp.float32) + bm, 0.0)
        # hid_mlp3_task1 is applied twice in the reference forward (intentional)
        t1 = jnp.maximum(
            jnp.dot(t1.astype(BF16), wm, preferred_element_type=jnp.float32) + bm, 0.0)
        res = jax.nn.sigmoid(
            jnp.dot(t1.astype(BF16), wo_ref[...],
                    preferred_element_type=jnp.float32) + bo_ref[...])       # (NN, 1)

        # Lane-dense output slab; caller slices [:batch_size, :1].
        o_ref[...] = jnp.broadcast_to(res, (NN, OUT_LANES))

    return kernel


# ----------------------------------------------------------------------------
# Parameters (gate-fused LSTM layout, biases = b_ih + b_hh)
# ----------------------------------------------------------------------------
def init_params(key, input_dim, hidden_dim, hid_dim):
    ks = jax.random.split(key, 21)

    def n(k, shape, s=0.1):
        return s * jax.random.normal(k, shape, F32)

    H4 = 4 * hidden_dim
    return {
        # lstm1 (gate order i|f|g|o along the last dim)
        "wih1": n(ks[0], (input_dim, H4)),
        "whh1": n(ks[1], (hidden_dim, H4)),
        "b1":   n(ks[2], (1, H4)),
        # condition_mlp + batch_norm1
        "wc":     n(ks[3], (hidden_dim, hid_dim)),
        "bc":     n(ks[4], (1, hid_dim)),
        "gamma1": 1.0 + n(ks[5], (1, hid_dim)),
        "beta1":  n(ks[6], (1, hid_dim)),
        # lstm2: stacked input weight over [operators(4) | extra_infos(56)] + cond_feat
        "w2opex": n(ks[7], (4 + 56, H4)),
        "w2c":    n(ks[8], (hid_dim, H4)),
        "whh2":   n(ks[9], (hidden_dim, H4)),
        "b2":     n(ks[10], (1, H4)),
        # head
        "gamma2": 1.0 + n(ks[11], (1, hidden_dim)),
        "beta2":  n(ks[12], (1, hidden_dim), 0.05),
        "w1":     n(ks[13], (hidden_dim, hid_dim)),
        "bh1":    n(ks[14], (1, hid_dim)),
        "gamma3": 1.0 + n(ks[15], (1, hid_dim)),
        "beta3":  n(ks[16], (1, hid_dim), 0.05),
        "wm":     n(ks[17], (hid_dim, hid_dim)),
        "bm":     n(ks[18], (1, hid_dim), 0.05),
        "wo":     n(ks[19], (hid_dim, 1)),
        "bo":     n(ks[20], (1, 1), 0.05),
    }


_WEIGHT_ORDER = ("wih1", "whh1", "b1",
                 "wc", "bc", "gamma1", "beta1",
                 "w2opex", "w2c", "whh2", "b2",
                 "gamma2", "beta2", "w1", "bh1", "gamma3", "beta3",
                 "wm", "bm", "wo", "bo")

# weights that feed the MXU -> pre-cast to bf16 (f32 accumulation in-kernel)
_MATMUL_WEIGHTS = frozenset(
    {"wih1", "whh1", "wc", "w2opex", "w2c", "whh2", "w1", "wm", "wo"})


# ----------------------------------------------------------------------------
# Forward wrapper: one fused pallas_call, no host sync before dispatch
# ----------------------------------------------------------------------------
def representation_forward(params, operators, extra_infos, conditions, mapping):
    NL, NN, NC, L = conditions.shape
    H = params["whh1"].shape[0]
    HID = params["wc"].shape[1]
    NLNN = NL * NN

    # Time-major flattened condition tokens: (NC*NLNN, L).  Row block t holds
    # token t of every (level, node) sequence, so the kernel hoists lstm1's
    # input projection into a single matmul.
    cond_tm = jnp.reshape(
        jnp.transpose(jnp.reshape(conditions, (NLNN, NC, L)), (1, 0, 2)),
        (NC * NLNN, L))

    # operators | extra_infos concatenated once here so lstm2's hoisted input
    # projection is one matmul per operand inside the kernel.
    opsex = jnp.reshape(
        jnp.concatenate([operators, extra_infos], axis=-1),
        (NLNN, operators.shape[-1] + extra_infos.shape[-1]))

    mapping_i32 = mapping.astype(jnp.int32)
    weights = [params[k].astype(BF16) if k in _MATMUL_WEIGHTS else params[k]
               for k in _WEIGHT_ORDER]

    kernel = _make_fused_kernel(NL, NN, NC, L, H, HID)
    vmem = pl.BlockSpec(memory_space=pltpu.MemorySpace.VMEM)

    slab = pl.pallas_call(
        kernel,
        in_specs=[vmem] * (3 + len(weights)),
        out_specs=vmem,
        out_shape=jax.ShapeDtypeStruct((NN, OUT_LANES), F32),
    )(cond_tm, opsex, mapping_i32, *weights)

    # batch_size (leading non-zero operator rows at level 0) recomputed with
    # tiny on-device jnp ops; the host reads it only AFTER the kernel has been
    # dispatched.  The read itself is unavoidable because the reference output
    # shape (batch_size, 1) is dynamic.
    row_sums = jnp.sum(operators[0], axis=-1)
    bsz_dev = jnp.maximum(
        jnp.min(jnp.where(row_sums == 0, jnp.arange(NN, dtype=jnp.int32), NN)), 1)
    batch_size = int(jax.device_get(bsz_dev))
    # TODO(synk): like the reference, this leading-run detection truncates the
    # batch if a legitimately-zero operator row appears mid-batch.

    return slab[:batch_size, 0:1]


# ----------------------------------------------------------------------------
if __name__ == "__main__":
    input_dim, hidden_dim, hid_dim = 8, 32, 16   # 4*hidden_dim == 128 -> lane-dense gates
    NL, NN, NC = 3, 8, 4                         # num_level, num_node_per_level, num_cond_per_node
    valid_nodes = 6                              # -> batch_size detected in forward

    params = init_params(jax.random.PRNGKey(0), input_dim, hidden_dim, hid_dim)

    dkeys = jax.random.split(jax.random.PRNGKey(0), 4)
    operators = jax.random.uniform(dkeys[0], (NL, NN, 4), F32) + 0.1
    operators = operators.at[0, valid_nodes:, :].set(0.0)   # trailing zero rows at level 0
    extra_infos = jax.random.normal(dkeys[1], (NL, NN, 56), F32)
    conditions = jax.random.normal(dkeys[2], (NL, NN, NC, input_dim), F32)
    mapping = jax.random.randint(dkeys[3], (NL, NN, 2), 0, NN + 1).astype(jnp.int32)

    out = representation_forward(params, operators, extra_infos, conditions, mapping)
    out = jax.block_until_ready(out)
    assert out.shape == (valid_nodes, 1), out.shape
    assert bool(jnp.all(jnp.isfinite(out)))
    print("KERNEL_OK")
</pallas_src>

<mosaic_0001>
module attributes {stable_mosaic.version = 11 : i64} {
  func.func @kernel(%arg0: memref<96x8xf32, #tpu.memory_space<vmem>>, %arg1: memref<24x60xf32, #tpu.memory_space<vmem>>, %arg2: memref<3x8x2xi32, #tpu.memory_space<vmem>>, %arg3: memref<8x128xbf16, #tpu.memory_space<vmem>>, %arg4: memref<32x128xbf16, #tpu.memory_space<vmem>>, %arg5: memref<1x128xf32, #tpu.memory_space<vmem>>, %arg6: memref<32x16xbf16, #tpu.memory_space<vmem>>, %arg7: memref<1x16xf32, #tpu.memory_space<vmem>>, %arg8: memref<1x16xf32, #tpu.memory_space<vmem>>, %arg9: memref<1x16xf32, #tpu.memory_space<vmem>>, %arg10: memref<60x128xbf16, #tpu.memory_space<vmem>>, %arg11: memref<16x128xbf16, #tpu.memory_space<vmem>>, %arg12: memref<32x128xbf16, #tpu.memory_space<vmem>>, %arg13: memref<1x128xf32, #tpu.memory_space<vmem>>, %arg14: memref<1x32xf32, #tpu.memory_space<vmem>>, %arg15: memref<1x32xf32, #tpu.memory_space<vmem>>, %arg16: memref<32x16xbf16, #tpu.memory_space<vmem>>, %arg17: memref<1x16xf32, #tpu.memory_space<vmem>>, %arg18: memref<1x16xf32, #tpu.memory_space<vmem>>, %arg19: memref<1x16xf32, #tpu.memory_space<vmem>>, %arg20: memref<16x16xbf16, #tpu.memory_space<vmem>>, %arg21: memref<1x16xf32, #tpu.memory_space<vmem>>, %arg22: memref<16x1xbf16, #tpu.memory_space<vmem>>, %arg23: memref<1x1xf32, #tpu.memory_space<vmem>>, %arg24: memref<8x128xf32, #tpu.memory_space<vmem>>) attributes {dimension_semantics = [], scalar_prefetch = 0 : i64, scratch_operands = 0 : i64, tpu.core_type = #tpu.core_type<tc>} {
    %c0 = arith.constant 0 : index
    %c0_0 = arith.constant 0 : index
    %0 = vector.load %arg0[%c0, %c0_0] : memref<96x8xf32, #tpu.memory_space<vmem>>, vector<96x8xf32>
    %1 = arith.truncf %0 : vector<96x8xf32> to vector<96x8xbf16>
    %c0_1 = arith.constant 0 : index
    %c0_2 = arith.constant 0 : index
    %2 = vector.load %arg3[%c0_1, %c0_2] : memref<8x128xbf16, #tpu.memory_space<vmem>>, vector<8x128xbf16>
    %cst = arith.constant dense<0.000000e+00> : vector<96x128xf32>
    %3 = tpu.matmul %1, %2, %cst {dimension_numbers = #tpu.dot_dimension_numbers<[1], [0], [0], [1], [0, 0, 1, 1], [], []>} : vector<96x8xbf16>, vector<8x128xbf16>, vector<96x128xf32> -> vector<96x128xf32>
    %c0_3 = arith.constant 0 : index
    %c0_4 = arith.constant 0 : index
    %4 = vector.load %arg5[%c0_3, %c0_4] : memref<1x128xf32, #tpu.memory_space<vmem>>, vector<1x128xf32>
    %5 = vector.broadcast %4 : vector<1x128xf32> to vector<96x128xf32>
    %6 = arith.addf %3, %5 : vector<96x128xf32>
    %c0_5 = arith.constant 0 : index
    %c0_6 = arith.constant 0 : index
    %7 = vector.load %arg4[%c0_5, %c0_6] : memref<32x128xbf16, #tpu.memory_space<vmem>>, vector<32x128xbf16>
    %8 = vector.extract_strided_slice %6 {offsets = [0, 0], sizes = [24, 128], strides = [1, 1]} : vector<96x128xf32> to vector<24x128xf32>
    %cst_7 = arith.constant 0.000000e+00 : f32
    %9 = vector.broadcast %cst_7 : f32 to vector<24x32xf32>
    %10 = arith.negf %8 : vector<24x128xf32>
    %11 = math.exp %10 : vector<24x128xf32>
    %cst_8 = arith.constant 1.000000e+00 : f32
    %12 = vector.broadcast %cst_8 : f32 to vector<24x128xf32>
    %13 = arith.addf %12, %11 : vector<24x128xf32>
    %14 = arith.divf %12, %13 : vector<24x128xf32>
    %15 = math.tanh %8 : vector<24x128xf32>
    %16 = vector.extract_strided_slice %14 {offsets = [0, 0], sizes = [24, 32], strides = [1, 1]} : vector<24x128xf32> to vector<24x32xf32>
    %17 = vector.extract_strided_slice %14 {offsets = [0, 32], sizes = [24, 32], strides = [1, 1]} : vector<24x128xf32> to vector<24x32xf32>
    %18 = vector.extract_strided_slice %14 {offsets = [0, 96], sizes = [24, 32], strides = [1, 1]} : vector<24x128xf32> to vector<24x32xf32>
    %19 = vector.extract_strided_slice %15 {offsets = [0, 64], sizes = [24, 32], strides = [1, 1]} : vector<24x128xf32> to vector<24x32xf32>
    %20 = arith.mulf %17, %9 : vector<24x32xf32>
    %21 = arith.mulf %16, %19 : vector<24x32xf32>
    %22 = arith.addf %20, %21 : vector<24x32xf32>
    %23 = math.tanh %22 : vector<24x32xf32>
    %24 = arith.mulf %18, %23 : vector<24x32xf32>
    %25 = vector.extract_strided_slice %6 {offsets = [24, 0], sizes = [24, 128], strides = [1, 1]} : vector<96x128xf32> to vector<24x128xf32>
    %26 = arith.truncf %24 : vector<24x32xf32> to vector<24x32xbf16>
    %cst_9 = arith.constant dense<0.000000e+00> : vector<24x128xf32>
    %27 = tpu.matmul %26, %7, %cst_9 {dimension_numbers = #tpu.dot_dimension_numbers<[1], [0], [0], [1], [0, 0, 1, 1], [], []>} : vector<24x32xbf16>, vector<32x128xbf16>, vector<24x128xf32> -> vector<24x128xf32>
    %28 = arith.addf %25, %27 : vector<24x128xf32>
    %29 = arith.negf %28 : vector<24x128xf32>
    %30 = math.exp %29 : vector<24x128xf32>
    %cst_10 = arith.constant 1.000000e+00 : f32
    %31 = vector.broadcast %cst_10 : f32 to vector<24x128xf32>
    %32 = arith.addf %31, %30 : vector<24x128xf32>
    %33 = arith.divf %31, %32 : vector<24x128xf32>
    %34 = math.tanh %28 : vector<24x128xf32>
    %35 = vector.extract_strided_slice %33 {offsets = [0, 0], sizes = [24, 32], strides = [1, 1]} : vector<24x128xf32> to vector<24x32xf32>
    %36 = vector.extract_strided_slice %33 {offsets = [0, 32], sizes = [24, 32], strides = [1, 1]} : vector<24x128xf32> to vector<24x32xf32>
    %37 = vector.extract_strided_slice %33 {offsets = [0, 96], sizes = [24, 32], strides = [1, 1]} : vector<24x128xf32> to vector<24x32xf32>
    %38 = vector.extract_strided_slice %34 {offsets = [0, 64], sizes = [24, 32], strides = [1, 1]} : vector<24x128xf32> to vector<24x32xf32>
    %39 = arith.mulf %36, %22 : vector<24x32xf32>
    %40 = arith.mulf %35, %38 : vector<24x32xf32>
    %41 = arith.addf %39, %40 : vector<24x32xf32>
    %42 = math.tanh %41 : vector<24x32xf32>
    %43 = arith.mulf %37, %42 : vector<24x32xf32>
    %44 = vector.extract_strided_slice %6 {offsets = [48, 0], sizes = [24, 128], strides = [1, 1]} : vector<96x128xf32> to vector<24x128xf32>
    %45 = arith.truncf %43 : vector<24x32xf32> to vector<24x32xbf16>
    %cst_11 = arith.constant dense<0.000000e+00> : vector<24x128xf32>
    %46 = tpu.matmul %45, %7, %cst_11 {dimension_numbers = #tpu.dot_dimension_numbers<[1], [0], [0], [1], [0, 0, 1, 1], [], []>} : vector<24x32xbf16>, vector<32x128xbf16>, vector<24x128xf32> -> vector<24x128xf32>
    %47 = arith.addf %44, %46 : vector<24x128xf32>
    %48 = arith.negf %47 : vector<24x128xf32>
    %49 = math.exp %48 : vector<24x128xf32>
    %cst_12 = arith.constant 1.000000e+00 : f32
    %50 = vector.broadcast %cst_12 : f32 to vector<24x128xf32>
    %51 = arith.addf %50, %49 : vector<24x128xf32>
    %52 = arith.divf %50, %51 : vector<24x128xf32>
    %53 = math.tanh %47 : vector<24x128xf32>
    %54 = vector.extract_strided_slice %52 {offsets = [0, 0], sizes = [24, 32], strides = [1, 1]} : vector<24x128xf32> to vector<24x32xf32>
    %55 = vector.extract_strided_slice %52 {offsets = [0, 32], sizes = [24, 32], strides = [1, 1]} : vector<24x128xf32> to vector<24x32xf32>
    %56 = vector.extract_strided_slice %52 {offsets = [0, 96], sizes = [24, 32], strides = [1, 1]} : vector<24x128xf32> to vector<24x32xf32>
    %57 = vector.extract_strided_slice %53 {offsets = [0, 64], sizes = [24, 32], strides = [1, 1]} : vector<24x128xf32> to vector<24x32xf32>
    %58 = arith.mulf %55, %41 : vector<24x32xf32>
    %59 = arith.mulf %54, %57 : vector<24x32xf32>
    %60 = arith.addf %58, %59 : vector<24x32xf32>
    %61 = math.tanh %60 : vector<24x32xf32>
    %62 = arith.mulf %56, %61 : vector<24x32xf32>
    %63 = vector.extract_strided_slice %6 {offsets = [72, 0], sizes = [24, 128], strides = [1, 1]} : vector<96x128xf32> to vector<24x128xf32>
    %64 = arith.truncf %62 : vector<24x32xf32> to vector<24x32xbf16>
    %cst_13 = arith.constant dense<0.000000e+00> : vector<24x128xf32>
    %65 = tpu.matmul %64, %7, %cst_13 {dimension_numbers = #tpu.dot_dimension_numbers<[1], [0], [0], [1], [0, 0, 1, 1], [], []>} : vector<24x32xbf16>, vector<32x128xbf16>, vector<24x128xf32> -> vector<24x128xf32>
    %66 = arith.addf %63, %65 : vector<24x128xf32>
    %67 = arith.negf %66 : vector<24x128xf32>
    %68 = math.exp %67 : vector<24x128xf32>
    %cst_14 = arith.constant 1.000000e+00 : f32
    %69 = vector.broadcast %cst_14 : f32 to vector<24x128xf32>
    %70 = arith.addf %69, %68 : vector<24x128xf32>
    %71 = arith.divf %69, %70 : vector<24x128xf32>
    %72 = math.tanh %66 : vector<24x128xf32>
    %73 = vector.extract_strided_slice %71 {offsets = [0, 0], sizes = [24, 32], strides = [1, 1]} : vector<24x128xf32> to vector<24x32xf32>
    %74 = vector.extract_strided_slice %71 {offsets = [0, 32], sizes = [24, 32], strides = [1, 1]} : vector<24x128xf32> to vector<24x32xf32>
    %75 = vector.extract_strided_slice %71 {offsets = [0, 96], sizes = [24, 32], strides = [1, 1]} : vector<24x128xf32> to vector<24x32xf32>
    %76 = vector.extract_strided_slice %72 {offsets = [0, 64], sizes = [24, 32], strides = [1, 1]} : vector<24x128xf32> to vector<24x32xf32>
    %77 = arith.mulf %74, %60 : vector<24x32xf32>
    %78 = arith.mulf %73, %76 : vector<24x32xf32>
    %79 = arith.addf %77, %78 : vector<24x32xf32>
    %80 = math.tanh %79 : vector<24x32xf32>
    %81 = arith.mulf %75, %80 : vector<24x32xf32>
    %82 = arith.truncf %81 : vector<24x32xf32> to vector<24x32xbf16>
    %c0_15 = arith.constant 0 : index
    %c0_16 = arith.constant 0 : index
    %83 = vector.load %arg6[%c0_15, %c0_16] : memref<32x16xbf16, #tpu.memory_space<vmem>>, vector<32x16xbf16>
    %cst_17 = arith.constant dense<0.000000e+00> : vector<24x16xf32>
    %84 = tpu.matmul %82, %83, %cst_17 {dimension_numbers = #tpu.dot_dimension_numbers<[1], [0], [0], [1], [0, 0, 1, 1], [], []>} : vector<24x32xbf16>, vector<32x16xbf16>, vector<24x16xf32> -> vector<24x16xf32>
    %c0_18 = arith.constant 0 : index
    %c0_19 = arith.constant 0 : index
    %85 = vector.load %arg7[%c0_18, %c0_19] : memref<1x16xf32, #tpu.memory_space<vmem>>, vector<1x16xf32>
    %86 = vector.broadcast %85 : vector<1x16xf32> to vector<24x16xf32>
    %87 = arith.addf %84, %86 : vector<24x16xf32>
    %cst_20 = arith.constant 0.000000e+00 : f32
    %88 = vector.broadcast %cst_20 : f32 to vector<24x16xf32>
    %89 = arith.maximumf %87, %88 : vector<24x16xf32>
    %c0_21 = arith.constant 0 : index
    %c0_22 = arith.constant 0 : index
    %90 = vector.load %arg8[%c0_21, %c0_22] : memref<1x16xf32, #tpu.memory_space<vmem>>, vector<1x16xf32>
    %c0_23 = arith.constant 0 : index
    %c0_24 = arith.constant 0 : index
    %91 = vector.load %arg9[%c0_23, %c0_24] : memref<1x16xf32, #tpu.memory_space<vmem>>, vector<1x16xf32>
    %cst_25 = arith.constant dense<0.000000e+00> : vector<16xf32>
    %92 = vector.multi_reduction <add>, %89, %cst_25 [0] : vector<24x16xf32> to vector<16xf32>
    %93 = vector.shape_cast %92 : vector<16xf32> to vector<1x16xf32>
    %cst_26 = arith.constant 2.400000e+01 : f32
    %94 = vector.broadcast %cst_26 : f32 to vector<1x16xf32>
    %95 = arith.divf %93, %94 : vector<1x16xf32>
    %96 = vector.broadcast %95 : vector<1x16xf32> to vector<24x16xf32>
    %97 = arith.subf %89, %96 : vector<24x16xf32>
    %98 = arith.mulf %97, %97 : vector<24x16xf32>
    %cst_27 = arith.constant dense<0.000000e+00> : vector<16xf32>
    %99 = vector.multi_reduction <add>, %98, %cst_27 [0] : vector<24x16xf32> to vector<16xf32>
    %100 = vector.shape_cast %99 : vector<16xf32> to vector<1x16xf32>
    %cst_28 = arith.constant 2.400000e+01 : f32
    %101 = vector.broadcast %cst_28 : f32 to vector<1x16xf32>
    %102 = arith.divf %100, %101 : vector<1x16xf32>
    %cst_29 = arith.constant 9.99999974E-6 : f32
    %103 = vector.broadcast %cst_29 : f32 to vector<1x16xf32>
    %104 = arith.addf %102, %103 : vector<1x16xf32>
    %105 = math.rsqrt %104 : vector<1x16xf32>
    %106 = vector.broadcast %105 : vector<1x16xf32> to vector<24x16xf32>
    %107 = arith.mulf %97, %106 : vector<24x16xf32>
    %108 = vector.broadcast %90 : vector<1x16xf32> to vector<24x16xf32>
    %109 = arith.mulf %107, %108 : vector<24x16xf32>
    %110 = vector.broadcast %91 : vector<1x16xf32> to vector<24x16xf32>
    %111 = arith.addf %109, %110 : vector<24x16xf32>
    %c0_30 = arith.constant 0 : index
    %c0_31 = arith.constant 0 : index
    %112 = vector.load %arg1[%c0_30, %c0_31] : memref<24x60xf32, #tpu.memory_space<vmem>>, vector<24x60xf32>
    %113 = arith.truncf %112 : vector<24x60xf32> to vector<24x60xbf16>
    %c0_32 = arith.constant 0 : index
    %c0_33 = arith.constant 0 : index
    %114 = vector.load %arg10[%c0_32, %c0_33] : memref<60x128xbf16, #tpu.memory_space<vmem>>, vector<60x128xbf16>
    %cst_34 = arith.constant dense<0.000000e+00> : vector<24x128xf32>
    %115 = tpu.matmul %113, %114, %cst_34 {dimension_numbers = #tpu.dot_dimension_numbers<[1], [0], [0], [1], [0, 0, 1, 1], [], []>} : vector<24x60xbf16>, vector<60x128xbf16>, vector<24x128xf32> -> vector<24x128xf32>
    %116 = arith.truncf %111 : vector<24x16xf32> to vector<24x16xbf16>
    %c0_35 = arith.constant 0 : index
    %c0_36 = arith.constant 0 : index
    %117 = vector.load %arg11[%c0_35, %c0_36] : memref<16x128xbf16, #tpu.memory_space<vmem>>, vector<16x128xbf16>
    %cst_37 = arith.constant dense<0.000000e+00> : vector<24x128xf32>
    %118 = tpu.matmul %116, %117, %cst_37 {dimension_numbers = #tpu.dot_dimension_numbers<[1], [0], [0], [1], [0, 0, 1, 1], [], []>} : vector<24x16xbf16>, vector<16x128xbf16>, vector<24x128xf32> -> vector<24x128xf32>
    %119 = arith.addf %115, %118 : vector<24x128xf32>
    %c0_38 = arith.constant 0 : index
    %c0_39 = arith.constant 0 : index
    %120 = vector.load %arg13[%c0_38, %c0_39] : memref<1x128xf32, #tpu.memory_space<vmem>>, vector<1x128xf32>
    %121 = vector.broadcast %120 : vector<1x128xf32> to vector<24x128xf32>
    %122 = arith.addf %119, %121 : vector<24x128xf32>
    %c0_40 = arith.constant 0 : index
    %c0_41 = arith.constant 0 : index
    %123 = vector.load %arg12[%c0_40, %c0_41] : memref<32x128xbf16, #tpu.memory_space<vmem>>, vector<32x128xbf16>
    %124 = tpu.iota {dimensions = array<i32: 1>} : vector<8x8xi32>
    %c1_i32 = arith.constant 1 : i32
    %125 = vector.broadcast %c1_i32 : i32 to vector<8x8xi32>
    %126 = arith.addi %124, %125 : vector<8x8xi32>
    %c0_42 = arith.constant 0 : index
    %c0_43 = arith.constant 0 : index
    %c0_44 = arith.constant 0 : index
    %127 = vector.load %arg2[%c0_42, %c0_43, %c0_44] : memref<3x8x2xi32, #tpu.memory_space<vmem>>, vector<1x8x2xi32>
    %128 = vector.shape_cast %127 : vector<1x8x2xi32> to vector<8x2xi32>
    %129 = vector.extract_strided_slice %128 {offsets = [0, 0], sizes = [8, 1], strides = [1, 1]} : vector<8x2xi32> to vector<8x1xi32>
    %130 = vector.extract_strided_slice %128 {offsets = [0, 1], sizes = [8, 1], strides = [1, 1]} : vector<8x2xi32> to vector<8x1xi32>
    %131 = vector.broadcast %129 : vector<8x1xi32> to vector<8x8xi32>
    %132 = arith.cmpi eq, %131, %126 : vector<8x8xi32>
    %133 = arith.extui %132 : vector<8x8xi1> to vector<8x8xi32>
    %134 = arith.sitofp %133 : vector<8x8xi32> to vector<8x8xf32>
    %135 = vector.broadcast %130 : vector<8x1xi32> to vector<8x8xi32>
    %136 = arith.cmpi eq, %135, %126 : vector<8x8xi32>
    %137 = arith.extui %136 : vector<8x8xi1> to vector<8x8xi32>
    %138 = arith.sitofp %137 : vector<8x8xi32> to vector<8x8xf32>
    %139 = arith.addf %134, %138 : vector<8x8xf32>
    %cst_45 = arith.constant 5.000000e-01 : f32
    %140 = vector.broadcast %cst_45 : f32 to vector<8x8xf32>
    %141 = arith.mulf %140, %139 : vector<8x8xf32>
    %c1 = arith.constant 1 : index
    %c0_46 = arith.constant 0 : index
    %c0_47 = arith.constant 0 : index
    %142 = vector.load %arg2[%c1, %c0_46, %c0_47] : memref<3x8x2xi32, #tpu.memory_space<vmem>>, vector<1x8x2xi32>
    %143 = vector.shape_cast %142 : vector<1x8x2xi32> to vector<8x2xi32>
    %144 = vector.extract_strided_slice %143 {offsets = [0, 0], sizes = [8, 1], strides = [1, 1]} : vector<8x2xi32> to vector<8x1xi32>
    %145 = vector.extract_strided_slice %143 {offsets = [0, 1], sizes = [8, 1], strides = [1, 1]} : vector<8x2xi32> to vector<8x1xi32>
    %146 = vector.broadcast %144 : vector<8x1xi32> to vector<8x8xi32>
    %147 = arith.cmpi eq, %146, %126 : vector<8x8xi32>
    %148 = arith.extui %147 : vector<8x8xi1> to vector<8x8xi32>
    %149 = arith.sitofp %148 : vector<8x8xi32> to vector<8x8xf32>
    %150 = vector.broadcast %145 : vector<8x1xi32> to vector<8x8xi32>
    %151 = arith.cmpi eq, %150, %126 : vector<8x8xi32>
    %152 = arith.extui %151 : vector<8x8xi1> to vector<8x8xi32>
    %153 = arith.sitofp %152 : vector<8x8xi32> to vector<8x8xf32>
    %154 = arith.addf %149, %153 : vector<8x8xf32>
    %cst_48 = arith.constant 5.000000e-01 : f32
    %155 = vector.broadcast %cst_48 : f32 to vector<8x8xf32>
    %156 = arith.mulf %155, %154 : vector<8x8xf32>
    %157 = vector.extract_strided_slice %122 {offsets = [16, 0], sizes = [8, 128], strides = [1, 1]} : vector<24x128xf32> to vector<8x128xf32>
    %cst_49 = arith.constant 0.000000e+00 : f32
    %158 = vector.broadcast %cst_49 : f32 to vector<8x32xf32>
    %159 = arith.negf %157 : vector<8x128xf32>
    %160 = math.exp %159 : vector<8x128xf32>
    %cst_50 = arith.constant 1.000000e+00 : f32
    %161 = vector.broadcast %cst_50 : f32 to vector<8x128xf32>
    %162 = arith.addf %161, %160 : vector<8x128xf32>
    %163 = arith.divf %161, %162 : vector<8x128xf32>
    %164 = math.tanh %157 : vector<8x128xf32>
    %165 = vector.extract_strided_slice %163 {offsets = [0, 0], sizes = [8, 32], strides = [1, 1]} : vector<8x128xf32> to vector<8x32xf32>
    %166 = vector.extract_strided_slice %163 {offsets = [0, 32], sizes = [8, 32], strides = [1, 1]} : vector<8x128xf32> to vector<8x32xf32>
    %167 = vector.extract_strided_slice %163 {offsets = [0, 96], sizes = [8, 32], strides = [1, 1]} : vector<8x128xf32> to vector<8x32xf32>
    %168 = vector.extract_strided_slice %164 {offsets = [0, 64], sizes = [8, 32], strides = [1, 1]} : vector<8x128xf32> to vector<8x32xf32>
    %169 = arith.mulf %166, %158 : vector<8x32xf32>
    %170 = arith.mulf %165, %168 : vector<8x32xf32>
    %171 = arith.addf %169, %170 : vector<8x32xf32>
    %172 = math.tanh %171 : vector<8x32xf32>
    %173 = arith.mulf %167, %172 : vector<8x32xf32>
    %174 = tpu.concatenate %173, %171 in 1 : vector<8x32xf32>, vector<8x32xf32> -> vector<8x64xf32>
    %cst_51 = arith.constant dense<0.000000e+00> : vector<8x64xf32>
    %175 = tpu.matmul %156, %174, %cst_51 {dimension_numbers = #tpu.dot_dimension_numbers<[1], [0], [0], [1], [0, 0, 1, 1], [], []>} : vector<8x8xf32>, vector<8x64xf32>, vector<8x64xf32> -> vector<8x64xf32>
    %176 = vector.extract_strided_slice %175 {offsets = [0, 0], sizes = [8, 32], strides = [1, 1]} : vector<8x64xf32> to vector<8x32xf32>
    %177 = vector.extract_strided_slice %175 {offsets = [0, 32], sizes = [8, 32], strides = [1, 1]} : vector<8x64xf32> to vector<8x32xf32>
    %178 = vector.extract_strided_slice %122 {offsets = [8, 0], sizes = [8, 128], strides = [1, 1]} : vector<24x128xf32> to vector<8x128xf32>
    %179 = arith.truncf %176 : vector<8x32xf32> to vector<8x32xbf16>
    %cst_52 = arith.constant dense<0.000000e+00> : vector<8x128xf32>
    %180 = tpu.matmul %179, %123, %cst_52 {dimension_numbers = #tpu.dot_dimension_numbers<[1], [0], [0], [1], [0, 0, 1, 1], [], []>} : vector<8x32xbf16>, vector<32x128xbf16>, vector<8x128xf32> -> vector<8x128xf32>
    %181 = arith.addf %178, %180 : vector<8x128xf32>
    %182 = arith.negf %181 : vector<8x128xf32>
    %183 = math.exp %182 : vector<8x128xf32>
    %cst_53 = arith.constant 1.000000e+00 : f32
    %184 = vector.broadcast %cst_53 : f32 to vector<8x128xf32>
    %185 = arith.addf %184, %183 : vector<8x128xf32>
    %186 = arith.divf %184, %185 : vector<8x128xf32>
    %187 = math.tanh %181 : vector<8x128xf32>
    %188 = vector.extract_strided_slice %186 {offsets = [0, 0], sizes = [8, 32], strides = [1, 1]} : vector<8x128xf32> to vector<8x32xf32>
    %189 = vector.extract_strided_slice %186 {offsets = [0, 32], sizes = [8, 32], strides = [1, 1]} : vector<8x128xf32> to vector<8x32xf32>
    %190 = vector.extract_strided_slice %186 {offsets = [0, 96], sizes = [8, 32], strides = [1, 1]} : vector<8x128xf32> to vector<8x32xf32>
    %191 = vector.extract_strided_slice %187 {offsets = [0, 64], sizes = [8, 32], strides = [1, 1]} : vector<8x128xf32> to vector<8x32xf32>
    %192 = arith.mulf %189, %177 : vector<8x32xf32>
    %193 = arith.mulf %188, %191 : vector<8x32xf32>
    %194 = arith.addf %192, %193 : vector<8x32xf32>
    %195 = math.tanh %194 : vector<8x32xf32>
    %196 = arith.mulf %190, %195 : vector<8x32xf32>
    %197 = tpu.concatenate %196, %194 in 1 : vector<8x32xf32>, vector<8x32xf32> -> vector<8x64xf32>
    %cst_54 = arith.constant dense<0.000000e+00> : vector<8x64xf32>
    %198 = tpu.matmul %141, %197, %cst_54 {dimension_numbers = #tpu.dot_dimension_numbers<[1], [0], [0], [1], [0, 0, 1, 1], [], []>} : vector<8x8xf32>, vector<8x64xf32>, vector<8x64xf32> -> vector<8x64xf32>
    %199 = vector.extract_strided_slice %198 {offsets = [0, 0], sizes = [8, 32], strides = [1, 1]} : vector<8x64xf32> to vector<8x32xf32>
    %200 = vector.extract_strided_slice %198 {offsets = [0, 32], sizes = [8, 32], strides = [1, 1]} : vector<8x64xf32> to vector<8x32xf32>
    %201 = vector.extract_strided_slice %122 {offsets = [0, 0], sizes = [8, 128], strides = [1, 1]} : vector<24x128xf32> to vector<8x128xf32>
    %202 = arith.truncf %199 : vector<8x32xf32> to vector<8x32xbf16>
    %cst_55 = arith.constant dense<0.000000e+00> : vector<8x128xf32>
    %203 = tpu.matmul %202, %123, %cst_55 {dimension_numbers = #tpu.dot_dimension_numbers<[1], [0], [0], [1], [0, 0, 1, 1], [], []>} : vector<8x32xbf16>, vector<32x128xbf16>, vector<8x128xf32> -> vector<8x128xf32>
    %204 = arith.addf %201, %203 : vector<8x128xf32>
    %205 = arith.negf %204 : vector<8x128xf32>
    %206 = math.exp %205 : vector<8x128xf32>
    %cst_56 = arith.constant 1.000000e+00 : f32
    %207 = vector.broadcast %cst_56 : f32 to vector<8x128xf32>
    %208 = arith.addf %207, %206 : vector<8x128xf32>
    %209 = arith.divf %207, %208 : vector<8x128xf32>
    %210 = math.tanh %204 : vector<8x128xf32>
    %211 = vector.extract_strided_slice %209 {offsets = [0, 0], sizes = [8, 32], strides = [1, 1]} : vector<8x128xf32> to vector<8x32xf32>
    %212 = vector.extract_strided_slice %209 {offsets = [0, 32], sizes = [8, 32], strides = [1, 1]} : vector<8x128xf32> to vector<8x32xf32>
    %213 = vector.extract_strided_slice %209 {offsets = [0, 96], sizes = [8, 32], strides = [1, 1]} : vector<8x128xf32> to vector<8x32xf32>
    %214 = vector.extract_strided_slice %210 {offsets = [0, 64], sizes = [8, 32], strides = [1, 1]} : vector<8x128xf32> to vector<8x32xf32>
    %215 = arith.mulf %212, %200 : vector<8x32xf32>
    %216 = arith.mulf %211, %214 : vector<8x32xf32>
    %217 = arith.addf %215, %216 : vector<8x32xf32>
    %218 = math.tanh %217 : vector<8x32xf32>
    %219 = arith.mulf %213, %218 : vector<8x32xf32>
    %c0_57 = arith.constant 0 : index
    %c0_58 = arith.constant 0 : index
    %220 = vector.load %arg1[%c0_57, %c0_58] : memref<24x60xf32, #tpu.memory_space<vmem>>, vector<8x4xf32>
    %cst_59 = arith.constant dense<0.000000e+00> : vector<8xf32>
    %221 = vector.multi_reduction <add>, %220, %cst_59 [1] : vector<8x4xf32> to vector<8xf32>
    %222 = vector.shape_cast %221 : vector<8xf32> to vector<8x1xf32>
    %223 = tpu.iota {dimensions = array<i32: 0>} : vector<8x1xi32>
    %224 = arith.sitofp %223 : vector<8x1xi32> to vector<8x1xf32>
    %cst_60 = arith.constant 0.000000e+00 : f32
    %225 = vector.broadcast %cst_60 : f32 to vector<8x1xf32>
    %226 = arith.cmpf oeq, %222, %225 : vector<8x1xf32>
    %cst_61 = arith.constant 8.000000e+00 : f32
    %227 = vector.broadcast %cst_61 : f32 to vector<8x1xf32>
    %228 = arith.select %226, %224, %227 : vector<8x1xi1>, vector<8x1xf32>
    %cst_62 = arith.constant dense<0x7F800000> : vector<1xf32>
    %229 = vector.multi_reduction <minimumf>, %228, %cst_62 [0] : vector<8x1xf32> to vector<1xf32>
    %230 = vector.shape_cast %229 : vector<1xf32> to vector<1x1xf32>
    %cst_63 = arith.constant 1.000000e+00 : f32
    %231 = vector.broadcast %cst_63 : f32 to vector<1x1xf32>
    %232 = arith.maximumf %230, %231 : vector<1x1xf32>
    %233 = vector.broadcast %232 : vector<1x1xf32> to vector<8x1xf32>
    %234 = arith.cmpf olt, %224, %233 : vector<8x1xf32>
    %235 = arith.extui %234 : vector<8x1xi1> to vector<8x1xi32>
    %236 = arith.sitofp %235 : vector<8x1xi32> to vector<8x1xf32>
    %cst_64 = arith.constant 1.000000e+00 : f32
    %237 = vector.broadcast %cst_64 : f32 to vector<1x1xf32>
    %238 = arith.divf %237, %232 : vector<1x1xf32>
    %c0_65 = arith.constant 0 : index
    %c0_66 = arith.constant 0 : index
    %239 = vector.load %arg14[%c0_65, %c0_66] : memref<1x32xf32, #tpu.memory_space<vmem>>, vector<1x32xf32>
    %c0_67 = arith.constant 0 : index
    %c0_68 = arith.constant 0 : index
    %240 = vector.load %arg15[%c0_67, %c0_68] : memref<1x32xf32, #tpu.memory_space<vmem>>, vector<1x32xf32>
    %241 = vector.broadcast %236 : vector<8x1xf32> to vector<8x32xf32>
    %242 = arith.mulf %219, %241 : vector<8x32xf32>
    %cst_69 = arith.constant dense<0.000000e+00> : vector<32xf32>
    %243 = vector.multi_reduction <add>, %242, %cst_69 [0] : vector<8x32xf32> to vector<32xf32>
    %244 = vector.shape_cast %243 : vector<32xf32> to vector<1x32xf32>
    %245 = vector.broadcast %238 : vector<1x1xf32> to vector<1x32xf32>
    %246 = arith.mulf %244, %245 : vector<1x32xf32>
    %247 = vector.broadcast %246 : vector<1x32xf32> to vector<8x32xf32>
    %248 = arith.subf %219, %247 : vector<8x32xf32>
    %249 = vector.broadcast %236 : vector<8x1xf32> to vector<8x32xf32>
    %250 = arith.mulf %248, %249 : vector<8x32xf32>
    %251 = arith.mulf %250, %250 : vector<8x32xf32>
    %cst_70 = arith.constant dense<0.000000e+00> : vector<32xf32>
    %252 = vector.multi_reduction <add>, %251, %cst_70 [0] : vector<8x32xf32> to vector<32xf32>
    %253 = vector.shape_cast %252 : vector<32xf32> to vector<1x32xf32>
    %254 = vector.broadcast %238 : vector<1x1xf32> to vector<1x32xf32>
    %255 = arith.mulf %253, %254 : vector<1x32xf32>
    %256 = vector.broadcast %246 : vector<1x32xf32> to vector<8x32xf32>
    %257 = arith.subf %219, %256 : vector<8x32xf32>
    %cst_71 = arith.constant 9.99999974E-6 : f32
    %258 = vector.broadcast %cst_71 : f32 to vector<1x32xf32>
    %259 = arith.addf %255, %258 : vector<1x32xf32>
    %260 = math.rsqrt %259 : vector<1x32xf32>
    %261 = vector.broadcast %260 : vector<1x32xf32> to vector<8x32xf32>
    %262 = arith.mulf %257, %261 : vector<8x32xf32>
    %263 = vector.broadcast %239 : vector<1x32xf32> to vector<8x32xf32>
    %264 = arith.mulf %262, %263 : vector<8x32xf32>
    %265 = vector.broadcast %240 : vector<1x32xf32> to vector<8x32xf32>
    %266 = arith.addf %264, %265 : vector<8x32xf32>
    %267 = arith.truncf %266 : vector<8x32xf32> to vector<8x32xbf16>
    %c0_72 = arith.constant 0 : index
    %c0_73 = arith.constant 0 : index
    %268 = vector.load %arg16[%c0_72, %c0_73] : memref<32x16xbf16, #tpu.memory_space<vmem>>, vector<32x16xbf16>
    %cst_74 = arith.constant dense<0.000000e+00> : vector<8x16xf32>
    %269 = tpu.matmul %267, %268, %cst_74 {dimension_numbers = #tpu.dot_dimension_numbers<[1], [0], [0], [1], [0, 0, 1, 1], [], []>} : vector<8x32xbf16>, vector<32x16xbf16>, vector<8x16xf32> -> vector<8x16xf32>
    %c0_75 = arith.constant 0 : index
    %c0_76 = arith.constant 0 : index
    %270 = vector.load %arg17[%c0_75, %c0_76] : memref<1x16xf32, #tpu.memory_space<vmem>>, vector<1x16xf32>
    %271 = vector.broadcast %270 : vector<1x16xf32> to vector<8x16xf32>
    %272 = arith.addf %269, %271 : vector<8x16xf32>
    %cst_77 = arith.constant 0.000000e+00 : f32
    %273 = vector.broadcast %cst_77 : f32 to vector<8x16xf32>
    %274 = arith.maximumf %272, %273 : vector<8x16xf32>
    %c0_78 = arith.constant 0 : index
    %c0_79 = arith.constant 0 : index
    %275 = vector.load %arg18[%c0_78, %c0_79] : memref<1x16xf32, #tpu.memory_space<vmem>>, vector<1x16xf32>
    %c0_80 = arith.constant 0 : index
    %c0_81 = arith.constant 0 : index
    %276 = vector.load %arg19[%c0_80, %c0_81] : memref<1x16xf32, #tpu.memory_space<vmem>>, vector<1x16xf32>
    %277 = vector.broadcast %236 : vector<8x1xf32> to vector<8x16xf32>
    %278 = arith.mulf %274, %277 : vector<8x16xf32>
    %cst_82 = arith.constant dense<0.000000e+00> : vector<16xf32>
    %279 = vector.multi_reduction <add>, %278, %cst_82 [0] : vector<8x16xf32> to vector<16xf32>
    %280 = vector.shape_cast %279 : vector<16xf32> to vector<1x16xf32>
    %281 = vector.broadcast %238 : vector<1x1xf32> to vector<1x16xf32>
    %282 = arith.mulf %280, %281 : vector<1x16xf32>
    %283 = vector.broadcast %282 : vector<1x16xf32> to vector<8x16xf32>
    %284 = arith.subf %274, %283 : vector<8x16xf32>
    %285 = vector.broadcast %236 : vector<8x1xf32> to vector<8x16xf32>
    %286 = arith.mulf %284, %285 : vector<8x16xf32>
    %287 = arith.mulf %286, %286 : vector<8x16xf32>
    %cst_83 = arith.constant dense<0.000000e+00> : vector<16xf32>
    %288 = vector.multi_reduction <add>, %287, %cst_83 [0] : vector<8x16xf32> to vector<16xf32>
    %289 = vector.shape_cast %288 : vector<16xf32> to vector<1x16xf32>
    %290 = vector.broadcast %238 : vector<1x1xf32> to vector<1x16xf32>
    %291 = arith.mulf %289, %290 : vector<1x16xf32>
    %292 = vector.broadcast %282 : vector<1x16xf32> to vector<8x16xf32>
    %293 = arith.subf %274, %292 : vector<8x16xf32>
    %cst_84 = arith.constant 9.99999974E-6 : f32
    %294 = vector.broadcast %cst_84 : f32 to vector<1x16xf32>
    %295 = arith.addf %291, %294 : vector<1x16xf32>
    %296 = math.rsqrt %295 : vector<1x16xf32>
    %297 = vector.broadcast %296 : vector<1x16xf32> to vector<8x16xf32>
    %298 = arith.mulf %293, %297 : vector<8x16xf32>
    %299 = vector.broadcast %275 : vector<1x16xf32> to vector<8x16xf32>
    %300 = arith.mulf %298, %299 : vector<8x16xf32>
    %301 = vector.broadcast %276 : vector<1x16xf32> to vector<8x16xf32>
    %302 = arith.addf %300, %301 : vector<8x16xf32>
    %c0_85 = arith.constant 0 : index
    %c0_86 = arith.constant 0 : index
    %303 = vector.load %arg20[%c0_85, %c0_86] : memref<16x16xbf16, #tpu.memory_space<vmem>>, vector<16x16xbf16>
    %c0_87 = arith.constant 0 : index
    %c0_88 = arith.constant 0 : index
    %304 = vector.load %arg21[%c0_87, %c0_88] : memref<1x16xf32, #tpu.memory_space<vmem>>, vector<1x16xf32>
    %305 = arith.truncf %302 : vector<8x16xf32> to vector<8x16xbf16>
    %cst_89 = arith.constant dense<0.000000e+00> : vector<8x16xf32>
    %306 = tpu.matmul %305, %303, %cst_89 {dimension_numbers = #tpu.dot_dimension_numbers<[1], [0], [0], [1], [0, 0, 1, 1], [], []>} : vector<8x16xbf16>, vector<16x16xbf16>, vector<8x16xf32> -> vector<8x16xf32>
    %307 = vector.broadcast %304 : vector<1x16xf32> to vector<8x16xf32>
    %308 = arith.addf %306, %307 : vector<8x16xf32>
    %cst_90 = arith.constant 0.000000e+00 : f32
    %309 = vector.broadcast %cst_90 : f32 to vector<8x16xf32>
    %310 = arith.maximumf %308, %309 : vector<8x16xf32>
    %311 = arith.truncf %310 : vector<8x16xf32> to vector<8x16xbf16>
    %cst_91 = arith.constant dense<0.000000e+00> : vector<8x16xf32>
    %312 = tpu.matmul %311, %303, %cst_91 {dimension_numbers = #tpu.dot_dimension_numbers<[1], [0], [0], [1], [0, 0, 1, 1], [], []>} : vector<8x16xbf16>, vector<16x16xbf16>, vector<8x16xf32> -> vector<8x16xf32>
    %313 = vector.broadcast %304 : vector<1x16xf32> to vector<8x16xf32>
    %314 = arith.addf %312, %313 : vector<8x16xf32>
    %cst_92 = arith.constant 0.000000e+00 : f32
    %315 = vector.broadcast %cst_92 : f32 to vector<8x16xf32>
    %316 = arith.maximumf %314, %315 : vector<8x16xf32>
    %317 = arith.truncf %316 : vector<8x16xf32> to vector<8x16xbf16>
    %c0_93 = arith.constant 0 : index
    %c0_94 = arith.constant 0 : index
    %318 = vector.load %arg22[%c0_93, %c0_94] : memref<16x1xbf16, #tpu.memory_space<vmem>>, vector<16x1xbf16>
    %cst_95 = arith.constant dense<0.000000e+00> : vector<8x1xf32>
    %319 = tpu.matmul %317, %318, %cst_95 {dimension_numbers = #tpu.dot_dimension_numbers<[1], [0], [0], [1], [0, 0, 1, 1], [], []>} : vector<8x16xbf16>, vector<16x1xbf16>, vector<8x1xf32> -> vector<8x1xf32>
    %c0_96 = arith.constant 0 : index
    %c0_97 = arith.constant 0 : index
    %320 = vector.load %arg23[%c0_96, %c0_97] : memref<1x1xf32, #tpu.memory_space<vmem>>, vector<1x1xf32>
    %321 = vector.broadcast %320 : vector<1x1xf32> to vector<8x1xf32>
    %322 = arith.addf %319, %321 : vector<8x1xf32>
    %323 = arith.negf %322 : vector<8x1xf32>
    %324 = math.exp %323 : vector<8x1xf32>
    %cst_98 = arith.constant 1.000000e+00 : f32
    %325 = vector.broadcast %cst_98 : f32 to vector<8x1xf32>
    %326 = arith.addf %325, %324 : vector<8x1xf32>
    %327 = arith.divf %325, %326 : vector<8x1xf32>
    %328 = vector.shape_cast %327 : vector<8x1xf32> to vector<8x1xf32>
    %329 = vector.broadcast %328 : vector<8x1xf32> to vector<8x128xf32>
    %c0_99 = arith.constant 0 : index
    %c0_100 = arith.constant 0 : index
    %330 = vector.load %arg24[%c0_99, %c0_100] : memref<8x128xf32, #tpu.memory_space<vmem>>, vector<8x128xf32>
    tpu.vector_store %arg24[%c0_99, %c0_100], %329 {strides = array<i32>} : memref<8x128xf32, #tpu.memory_space<vmem>>, vector<8x128xf32>,
    return
  }
}

</mosaic_0001>

<llo_original>
// kernel: tpu_custom_call.1
$region0: #{tpu_custom_call.1}
  #allocation0 [shape = 'u32[]', space=smem, size = 0x4, offset = 0x4, fixed_abs, tag = 'smem constant byte address 0x4 - core index']
  #allocation1 [shape = 'u32[144,128]{1,0:T(1,128)}', space=vmem, size = 0x12000, scoped, tag = 'internal scratch']
  #allocation2 [shape = 'f32[1,1]{1,0:T(1,128)S(1)}', space=vmem, size = 0x200, scoped, tag = 'scoped memory for tpu_custom_call.1']
  %s0 = inlined_call_operand.vmem [shape: f32[96,8], index: 0, kind: input, shape index: {}]
  %s1 = inlined_call_operand.vmem [shape: f32[24,60], index: 1, kind: input, shape index: {}]
  %s2 = inlined_call_operand.vmem [shape: s32[3,8,2], index: 2, kind: input, shape index: {}]
  %s3 = inlined_call_operand.vmem [shape: bf16[8,128], index: 3, kind: input, shape index: {}]
  %s4 = inlined_call_operand.vmem [shape: bf16[32,128], index: 4, kind: input, shape index: {}]
  %s5 = inlined_call_operand.vmem [shape: f32[1,128], index: 5, kind: input, shape index: {}]
  %s6 = inlined_call_operand.vmem [shape: bf16[32,16], index: 6, kind: input, shape index: {}]
  %s7 = inlined_call_operand.vmem [shape: f32[1,16], index: 7, kind: input, shape index: {}]
  %s8 = inlined_call_operand.vmem [shape: f32[1,16], index: 8, kind: input, shape index: {}]
  %s9 = inlined_call_operand.vmem [shape: f32[1,16], index: 9, kind: input, shape index: {}]
  %s10 = inlined_call_operand.vmem [shape: bf16[60,128], index: 10, kind: input, shape index: {}]
  %s11 = inlined_call_operand.vmem [shape: bf16[16,128], index: 11, kind: input, shape index: {}]
  %s12 = inlined_call_operand.vmem [shape: bf16[32,128], index: 12, kind: input, shape index: {}]
  %s13 = inlined_call_operand.vmem [shape: f32[1,128], index: 13, kind: input, shape index: {}]
  %s14 = inlined_call_operand.vmem [shape: f32[1,32], index: 14, kind: input, shape index: {}]
  %s15 = inlined_call_operand.vmem [shape: f32[1,32], index: 15, kind: input, shape index: {}]
  %s16 = inlined_call_operand.vmem [shape: bf16[32,16], index: 16, kind: input, shape index: {}]
  %s17 = inlined_call_operand.vmem [shape: f32[1,16], index: 17, kind: input, shape index: {}]
  %s18 = inlined_call_operand.vmem [shape: f32[1,16], index: 18, kind: input, shape index: {}]
  %s19 = inlined_call_operand.vmem [shape: f32[1,16], index: 19, kind: input, shape index: {}]
  %s20 = inlined_call_operand.vmem [shape: bf16[16,16], index: 20, kind: input, shape index: {}]
  %s21 = inlined_call_operand.vmem [shape: f32[1,16], index: 21, kind: input, shape index: {}]
  %s22 = inlined_call_operand.vmem [shape: bf16[16,1], index: 22, kind: input, shape index: {}]
  %s23 = inlined_call_operand.<no memory space> [shape: f32[1,1], index: 23, kind: input, shape index: {}]
  %s24 = inlined_call_operand.hbm [shape: f32[8,128], index: 24, kind: output, shape index: {}]
  %s25 = sld [smem:[#allocation0]]
  $region106: #{tpu_custom_call.1} parent=0
    _
  %s27 = ssub.s32 1, %s25
  %s28 = scalar_select 0, %s27, %s25
  %v29 = vstv %s23
  %30 = vst [vmem:[#allocation2] sm:$0x1] %v29
  $region1: #{tpu_custom_call.1} parent=0
    #allocation3 [shape = 'u8[4096]{0}', space=vmem, size = 0x1000, scoped, tag = 'output window, operand 0, single buffered']
    #allocation4 [shape = 's32[1]{0}', space=sflag, size = 0x4, scoped, tag = 'scoped memory for tpu_custom_call.1']
    %31 = vsyncpa [#allocation4], 0
    // Predicated region
    $region2: #{tpu_custom_call.1} parent=1 // pred_check
      _
    $region3: #{tpu_custom_call.1} parent=1 // pred_check_branch
      %33 = sbr.rel (0) target = $region5
    $region4: #{tpu_custom_call.1} parent=1 // pred_region
      _
    $region5: #{tpu_custom_call.1} parent=1 // pred_fallthru
      _
    // Predicated region
    $region6: #{tpu_custom_call.1} parent=1 // pred_check
      _
    $region7: #{tpu_custom_call.1} parent=1 // pred_check_branch
      %35 = sbr.rel (0) target = $region9
    $region8: #{tpu_custom_call.1} parent=1 // pred_region
      _
    $region9: #{tpu_custom_call.1} parent=1 // pred_fallthru
      _
    // Predicated region
    $region10: #{tpu_custom_call.1} parent=1 // pred_check
      _
    $region11: #{tpu_custom_call.1} parent=1 // pred_check_branch
      %37 = sbr.rel (0) target = $region13
    $region12: #{tpu_custom_call.1} parent=1 // pred_region
      _
    $region13: #{tpu_custom_call.1} parent=1 // pred_fallthru
      _
    // Predicated region
    $region14: #{tpu_custom_call.1} parent=1 // pred_check
      _
    $region15: #{tpu_custom_call.1} parent=1 // pred_check_branch
      %39 = sbr.rel (0) target = $region17
    $region16: #{tpu_custom_call.1} parent=1 // pred_region
      _
    $region17: #{tpu_custom_call.1} parent=1 // pred_fallthru
      _
    // Predicated region
    $region18: #{tpu_custom_call.1} parent=1 // pred_check
      _
    $region19: #{tpu_custom_call.1} parent=1 // pred_check_branch
      %41 = sbr.rel (0) target = $region21
    $region20: #{tpu_custom_call.1} parent=1 // pred_region
      _
    $region21: #{tpu_custom_call.1} parent=1 // pred_fallthru
      _
    // Predicated region
    $region22: #{tpu_custom_call.1} parent=1 // pred_check
      _
    $region23: #{tpu_custom_call.1} parent=1 // pred_check_branch
      %43 = sbr.rel (0) target = $region25
    $region24: #{tpu_custom_call.1} parent=1 // pred_region
      _
    $region25: #{tpu_custom_call.1} parent=1 // pred_fallthru
      _
    // Predicated region
    $region26: #{tpu_custom_call.1} parent=1 // pred_check
      _
    $region27: #{tpu_custom_call.1} parent=1 // pred_check_branch
      %45 = sbr.rel (0) target = $region29
    $region28: #{tpu_custom_call.1} parent=1 // pred_region
      _
    $region29: #{tpu_custom_call.1} parent=1 // pred_fallthru
      _
    // Predicated region
    $region30: #{tpu_custom_call.1} parent=1 // pred_check
      _
    $region31: #{tpu_custom_call.1} parent=1 // pred_check_branch
      %47 = sbr.rel (0) target = $region33
    $region32: #{tpu_custom_call.1} parent=1 // pred_region
      _
    $region33: #{tpu_custom_call.1} parent=1 // pred_fallthru
      _
    // Predicated region
    $region34: #{tpu_custom_call.1} parent=1 // pred_check
      _
    $region35: #{tpu_custom_call.1} parent=1 // pred_check_branch
      %49 = sbr.rel (0) target = $region37
    $region36: #{tpu_custom_call.1} parent=1 // pred_region
      _
    $region37: #{tpu_custom_call.1} parent=1 // pred_fallthru
      _
    // Predicated region
    $region38: #{tpu_custom_call.1} parent=1 // pred_check
      _
    $region39: #{tpu_custom_call.1} parent=1 // pred_check_branch
      %51 = sbr.rel (0) target = $region41
    $region40: #{tpu_custom_call.1} parent=1 // pred_region
      _
    $region41: #{tpu_custom_call.1} parent=1 // pred_fallthru
      _
    // Predicated region
    $region42: #{tpu_custom_call.1} parent=1 // pred_check
      _
    $region43: #{tpu_custom_call.1} parent=1 // pred_check_branch
      %53 = sbr.rel (0) target = $region45
    $region44: #{tpu_custom_call.1} parent=1 // pred_region
      _
    $region45: #{tpu_custom_call.1} parent=1 // pred_fallthru
      _
    // Predicated region
    $region46: #{tpu_custom_call.1} parent=1 // pred_check
      _
    $region47: #{tpu_custom_call.1} parent=1 // pred_check_branch
      %55 = sbr.rel (0) target = $region49
    $region48: #{tpu_custom_call.1} parent=1 // pred_region
      _
    $region49: #{tpu_custom_call.1} parent=1 // pred_fallthru
      _
    // Predicated region
    $region50: #{tpu_custom_call.1} parent=1 // pred_check
      _
    $region51: #{tpu_custom_call.1} parent=1 // pred_check_branch
      %57 = sbr.rel (0) target = $region53
    $region52: #{tpu_custom_call.1} parent=1 // pred_region
      _
    $region53: #{tpu_custom_call.1} parent=1 // pred_fallthru
      _
    // Predicated region
    $region54: #{tpu_custom_call.1} parent=1 // pred_check
      _
    $region55: #{tpu_custom_call.1} parent=1 // pred_check_branch
      %59 = sbr.rel (0) target = $region57
    $region56: #{tpu_custom_call.1} parent=1 // pred_region
      _
    $region57: #{tpu_custom_call.1} parent=1 // pred_fallthru
      _
    // Predicated region
    $region58: #{tpu_custom_call.1} parent=1 // pred_check
      _
    $region59: #{tpu_custom_call.1} parent=1 // pred_check_branch
      %61 = sbr.rel (0) target = $region61
    $region60: #{tpu_custom_call.1} parent=1 // pred_region
      _
    $region61: #{tpu_custom_call.1} parent=1 // pred_fallthru
      _
    // Predicated region
    $region62: #{tpu_custom_call.1} parent=1 // pred_check
      _
    $region63: #{tpu_custom_call.1} parent=1 // pred_check_branch
      %63 = sbr.rel (0) target = $region65
    $region64: #{tpu_custom_call.1} parent=1 // pred_region
      _
    $region65: #{tpu_custom_call.1} parent=1 // pred_fallthru
      _
    // Predicated region
    $region66: #{tpu_custom_call.1} parent=1 // pred_check
      _
    $region67: #{tpu_custom_call.1} parent=1 // pred_check_branch
      %65 = sbr.rel (0) target = $region69
    $region68: #{tpu_custom_call.1} parent=1 // pred_region
      _
    $region69: #{tpu_custom_call.1} parent=1 // pred_fallthru
      _
    // Predicated region
    $region70: #{tpu_custom_call.1} parent=1 // pred_check
      _
    $region71: #{tpu_custom_call.1} parent=1 // pred_check_branch
      %67 = sbr.rel (0) target = $region73
    $region72: #{tpu_custom_call.1} parent=1 // pred_region
      _
    $region73: #{tpu_custom_call.1} parent=1 // pred_fallthru
      _
    // Predicated region
    $region74: #{tpu_custom_call.1} parent=1 // pred_check
      _
    $region75: #{tpu_custom_call.1} parent=1 // pred_check_branch
      %69 = sbr.rel (0) target = $region77
    $region76: #{tpu_custom_call.1} parent=1 // pred_region
      _
    $region77: #{tpu_custom_call.1} parent=1 // pred_fallthru
      _
    // Predicated region
    $region78: #{tpu_custom_call.1} parent=1 // pred_check
      _
    $region79: #{tpu_custom_call.1} parent=1 // pred_check_branch
      %71 = sbr.rel (0) target = $region81
    $region80: #{tpu_custom_call.1} parent=1 // pred_region
      _
    $region81: #{tpu_custom_call.1} parent=1 // pred_fallthru
      _
    // Predicated region
    $region82: #{tpu_custom_call.1} parent=1 // pred_check
      _
    $region83: #{tpu_custom_call.1} parent=1 // pred_check_branch
      %73 = sbr.rel (0) target = $region85
    $region84: #{tpu_custom_call.1} parent=1 // pred_region
      _
    $region85: #{tpu_custom_call.1} parent=1 // pred_fallthru
      _
    // Predicated region
    $region86: #{tpu_custom_call.1} parent=1 // pred_check
      _
    $region87: #{tpu_custom_call.1} parent=1 // pred_check_branch
      %75 = sbr.rel (0) target = $region89
    $region88: #{tpu_custom_call.1} parent=1 // pred_region
      _
    $region89: #{tpu_custom_call.1} parent=1 // pred_fallthru
      _
    // Predicated region
    $region90: #{tpu_custom_call.1} parent=1 // pred_check
      _
    $region91: #{tpu_custom_call.1} parent=1 // pred_check_branch
      %77 = sbr.rel (0) target = $region93
    $region92: #{tpu_custom_call.1} parent=1 // pred_region
      _
    $region93: #{tpu_custom_call.1} parent=1 // pred_fallthru
      _
    // Predicated region
    $region94: #{tpu_custom_call.1} parent=1 // pred_check
      _
    $region95: #{tpu_custom_call.1} parent=1 // pred_check_branch
      %79 = sbr.rel (0) target = $region97
    $region96: #{tpu_custom_call.1} parent=1 // pred_region
      _
    $region97: #{tpu_custom_call.1} parent=1 // pred_fallthru
      _
    %v81 = vld [vmem:[%s0] sm:$0xff]
    %v82 = vld [vmem:[%s0 + $0x8] sm:$0xff]
    %v83 = vld [vmem:[%s0 + $0x10] sm:$0xff]
    %v84 = vld [vmem:[%s0 + $0x18] sm:$0xff]
    %v85 = vld [vmem:[%s0 + $0x20] sm:$0xff]
    %v86 = vld [vmem:[%s0 + $0x28] sm:$0xff]
    %v87 = vld [vmem:[%s0 + $0x30] sm:$0xff]
    %v88 = vld [vmem:[%s0 + $0x38] sm:$0xff]
    %v89 = vld [vmem:[%s0 + $0x40] sm:$0xff]
    %v90 = vld [vmem:[%s0 + $0x48] sm:$0xff]
    %v91 = vld [vmem:[%s0 + $0x50] sm:$0xff]
    %v92 = vld [vmem:[%s0 + $0x58] sm:$0xff]
    %v93 = vpack.c.bf16 %v82, %v81
    %v94 = vpack.c.bf16 %v84, %v83
    %v95 = vpack.c.bf16 %v86, %v85
    %v96 = vpack.c.bf16 %v88, %v87
    %v97 = vpack.c.bf16 %v90, %v89
    %v98 = vpack.c.bf16 %v92, %v91
    %v99 = vld [vmem:[%s3] sm:$0xf]
    %v100 = vld [vmem:[%s5] sm:$0x1]
    %v102 = vlaneseq
    %v103 = vshrl.u32 %v102, 7
    %v104 = vsub.s32 0, %v103
    %v105 = vrot.slane %v100, %v104
    %vm107 = vcmask 64512
    %v109 = vsel %vm107, %v93, 0
    %v112 = vsel %vm107, %v94, 0
    %v115 = vsel %vm107, %v95, 0
    %v118 = vsel %vm107, %v96, 0
    %v121 = vsel %vm107, %v97, 0
    %v124 = vsel %vm107, %v98, 0
    %vm126 = vcmask 1043456
    %v128 = vsel %vm126, %v99, 0
    %130 = vmatprep.subr.bf16.mxu0 0
    %131 = vmatpush1.bf16.msra.mxu0 0
    %132 = vmatprep.subr.bf16.mxu0 0
    %133 = vmatpush1.bf16.msra.mxu0 0
    %134 = vmatprep.subr.bf16.mxu0 0
    %135 = vmatpush1.bf16.msra.mxu0 0
    %136 = vmatprep.subr.bf16.mxu0 0
    %137 = vmatpush1.bf16.msra.mxu0 0
    %138 = vmatprep.subr.bf16.mxu0 0
    %139 = vmatpush1.bf16.msra.mxu0 0
    %140 = vmatprep.subr.bf16.mxu0 0
    %141 = vmatpush1.bf16.msra.mxu0 0
    %142 = vmatprep.subr.bf16.mxu0 0
    %143 = vmatpush1.bf16.msra.mxu0 0
    %144 = vmatprep.subr.bf16.mxu0 0
    %145 = vmatpush1.bf16.msra.mxu0 %v128
    %146 = vmatprep.subr.bf16.mxu0 0
    %147 = vmatpush2.bf16.msra.mxu0 0
    %148 = vmatprep.subr.bf16.mxu0 0
    %149 = vmatpush2.bf16.msra.mxu0 0
    %150 = vmatprep.subr.bf16.mxu0 0
    %151 = vmatpush2.bf16.msra.mxu0 0
    %152 = vmatprep.subr.bf16.mxu0 0
    %153 = vmatpush2.bf16.msra.mxu0 0
    %154 = vmatprep.subr.bf16.mxu0 0
    %155 = vmatpush2.bf16.msra.mxu0 0
    %156 = vmatprep.subr.bf16.mxu0 0
    %157 = vmatpush2.bf16.msra.mxu0 0
    %158 = vmatprep.subr.bf16.mxu0 0
    %159 = vmatpush2.bf16.msra.mxu0 0
    %160 = vmatprep.subr.bf16.mxu0 0
    %161 = vmatpush2.bf16.msra.mxu0 0
    %162 = vmatprep.mubr.bf16.mxu0 0
    %163 = vmatmul.mubr.bf16.gmra.mxu0 %v109
    %v164 = vpop.f32.mrf.mxu0
    %v165 = vadd.f32 %v105, %v164
    %v166 = vpop.f32.mrf.mxu0
    %v167 = vpop.f32.mrf.mxu0
    %v168 = vadd.f32 %v105, %v167
    %v169 = vpop.f32.mrf.mxu0
    %170 = vmatprep.mubr.bf16.mxu0 0
    %171 = vmatmul.mubr.bf16.gmra.mxu0 %v112
    %v172 = vpop.f32.mrf.mxu0
    %v173 = vadd.f32 %v105, %v172
    %v174 = vpop.f32.mrf.mxu0
    %v175 = vpop.f32.mrf.mxu0
    %v176 = vadd.f32 %v105, %v175
    %v177 = vpop.f32.mrf.mxu0
    %178 = vmatprep.mubr.bf16.mxu0 0
    %179 = vmatmul.mubr.bf16.gmra.mxu0 %v115
    %v180 = vpop.f32.mrf.mxu0
    %v181 = vadd.f32 %v105, %v180
    %v182 = vpop.f32.mrf.mxu0
    %v183 = vpop.f32.mrf.mxu0
    %v184 = vadd.f32 %v105, %v183
    %v185 = vpop.f32.mrf.mxu0
    %186 = vmatprep.mubr.bf16.mxu0 0
    %187 = vmatmul.mubr.bf16.gmra.mxu0 %v118
    %v188 = vpop.f32.mrf.mxu0
    %v189 = vadd.f32 %v105, %v188
    %v190 = vpop.f32.mrf.mxu0
    %v191 = vpop.f32.mrf.mxu0
    %v192 = vadd.f32 %v105, %v191
    %v193 = vpop.f32.mrf.mxu0
    %194 = vmatprep.mubr.bf16.mxu0 0
    %195 = vmatmul.mubr.bf16.gmra.mxu0 %v121
    %v196 = vpop.f32.mrf.mxu0
    %v197 = vadd.f32 %v105, %v196
    %v198 = vpop.f32.mrf.mxu0
    %v199 = vpop.f32.mrf.mxu0
    %v200 = vadd.f32 %v105, %v199
    %v201 = vpop.f32.mrf.mxu0
    %202 = vmatprep.mubr.bf16.mxu0 0
    %203 = vmatmul.mubr.bf16.gmra.mxu0 %v124
    %v204 = vpop.f32.mrf.mxu0
    %v205 = vadd.f32 %v105, %v204
    %v206 = vpop.f32.mrf.mxu0
    %v207 = vpop.f32.mrf.mxu0
    %v208 = vadd.f32 %v105, %v207
    %v209 = vpop.f32.mrf.mxu0
    %210 = vdwg.mxu0
    %v211 = vld [vmem:[%s4] sm:$0xf]
    %v212 = vld [vmem:[%s4 + $0x4] sm:$0xf]
    %v213 = vld [vmem:[%s4 + $0x8] sm:$0xf]
    %v214 = vld [vmem:[%s4 + $0xc] sm:$0xf]
    %v215 = vxor.u32 %v165, 2147483648
    %v216 = vxor.u32 %v168, 2147483648
    %v217 = vxor.u32 %v173, 2147483648
    %v218 = vmul.f32 %v215, 1.442695
    %v219 = vpow.pop %v218
    %v220 = vmul.f32 %v216, 1.442695
    %v221 = vpow.pop %v220
    %v222 = vmul.f32 %v217, 1.442695
    %v223 = vpow.pop %v222
    %v224 = vadd.f32 %v219, 1.0
    %v225 = vadd.f32 %v221, 1.0
    %v226 = vadd.f32 %v223, 1.0
    %v227 = vrcp.pop %v224
    %v228 = vmul.f32 1.0, %v227
    %v229 = vrcp.pop %v225
    %v230 = vmul.f32 1.0, %v229
    %v231 = vrcp.pop %v226
    %v232 = vmul.f32 1.0, %v231
    %v233 = vtanh.pop %v165
    %v234 = vtanh.pop %v168
    %v235 = vtanh.pop %v173
    %v236 = vmul.f32 %v228, 0.0
    %v237 = vmul.f32 %v230, 0.0
    %v238 = vmul.f32 %v232, 0.0
    %242 = vrot.lane.b32.xlu0 %v233, 64
    %v243 = vpop.permute.xlu0 %242
    %244 = vrot.lane.b32.xlu0 %v234, 64
    %v245 = vpop.permute.xlu0 %244
    %246 = vrot.lane.b32.xlu0 %v235, 64
    %v247 = vpop.permute.xlu0 %246
    %v251 = vmul.f32 %v228, %v243
    %v252 = vmul.f32 %v230, %v245
    %v253 = vmul.f32 %v232, %v247
    %257 = vrot.lane.b32.xlu0 %v251, 32
    %v258 = vpop.permute.xlu0 %257
    %259 = vrot.lane.b32.xlu0 %v252, 32
    %v260 = vpop.permute.xlu0 %259
    %261 = vrot.lane.b32.xlu0 %v253, 32
    %v262 = vpop.permute.xlu0 %261
    %v266 = vadd.f32 %v236, %v258
    %v267 = vadd.f32 %v237, %v260
    %v268 = vadd.f32 %v238, %v262
    %v269 = vtanh.pop %v266
    %v270 = vtanh.pop %v267
    %v271 = vtanh.pop %v268
    %275 = vrot.lane.b32.xlu0 %v269, 64
    %v276 = vpop.permute.xlu0 %275
    %277 = vrot.lane.b32.xlu0 %v270, 64
    %v278 = vpop.permute.xlu0 %277
    %279 = vrot.lane.b32.xlu0 %v271, 64
    %v280 = vpop.permute.xlu0 %279
    %v284 = vmul.f32 %v228, %v276
    %v285 = vmul.f32 %v230, %v278
    %v286 = vmul.f32 %v232, %v280
    %v287 = vpack.c.bf16 %v285, %v284
    %v288 = vpack.c.bf16 %v286, %v286
    %291 = vrot.lane.b32.xlu0 %v287, 32
    %v292 = vpop.permute.xlu0 %291
    %293 = vrot.lane.b32.xlu0 %v288, 32
    %v294 = vpop.permute.xlu0 %293
    %v299 = vunpack.c.l.b16 %v211
    %v300 = vunpack.c.l.b16 %v212
    %v301 = vunpack.c.l.b16 %v213
    %v302 = vunpack.c.l.b16 %v214
    %v303 = vpack.c.b16 %v300, %v299
    %v304 = vpack.c.b16 %v302, %v301
    %vm307 = vcmask 261120
    %v309 = vsel %vm307, %v292, 0
    %v312 = vsel %vm307, %v294, 0
    %314 = vmatprep.subr.bf16.mxu0 0
    %315 = vmatpush1.bf16.msra.mxu0 0
    %316 = vmatprep.subr.bf16.mxu0 0
    %317 = vmatpush1.bf16.msra.mxu0 0
    %318 = vmatprep.subr.bf16.mxu0 0
    %319 = vmatpush1.bf16.msra.mxu0 0
    %320 = vmatprep.subr.bf16.mxu0 0
    %321 = vmatpush1.bf16.msra.mxu0 0
    %322 = vmatprep.subr.bf16.mxu0 0
    %323 = vmatpush1.bf16.msra.mxu0 0
    %324 = vmatprep.subr.bf16.mxu0 0
    %325 = vmatpush1.bf16.msra.mxu0 0
    %326 = vmatprep.subr.bf16.mxu0 0
    %327 = vmatpush1.bf16.msra.mxu0 %v304
    %328 = vmatprep.subr.bf16.mxu0 0
    %329 = vmatpush1.bf16.msra.mxu0 %v303
    %330 = vmatprep.subr.bf16.mxu0 0
    %331 = vmatpush2.bf16.msra.mxu0 0
    %332 = vmatprep.subr.bf16.mxu0 0
    %333 = vmatpush2.bf16.msra.mxu0 0
    %334 = vmatprep.subr.bf16.mxu0 0
    %335 = vmatpush2.bf16.msra.mxu0 0
    %336 = vmatprep.subr.bf16.mxu0 0
    %337 = vmatpush2.bf16.msra.mxu0 0
    %338 = vmatprep.subr.bf16.mxu0 0
    %339 = vmatpush2.bf16.msra.mxu0 0
    %340 = vmatprep.subr.bf16.mxu0 0
    %341 = vmatpush2.bf16.msra.mxu0 0
    %342 = vmatprep.subr.bf16.mxu0 0
    %343 = vmatpush2.bf16.msra.mxu0 0
    %344 = vmatprep.subr.bf16.mxu0 0
    %345 = vmatpush2.bf16.msra.mxu0 0
    %346 = vmatprep.mubr.bf16.mxu0 0
    %347 = vmatmul.mubr.bf16.gmra.mxu0 %v309
    %v348 = vpop.f32.mrf.mxu0
    %v349 = vadd.f32 0.0, %v348
    %v350 = vpop.f32.mrf.mxu0
    %v351 = vpop.f32.mrf.mxu0
    %v352 = vadd.f32 0.0, %v351
    %v353 = vpop.f32.mrf.mxu0
    %354 = vmatprep.mubr.bf16.mxu0 0
    %355 = vmatmul.mubr.bf16.gmra.mxu0 %v312
    %v356 = vpop.f32.mrf.mxu0
    %v357 = vadd.f32 0.0, %v356
    %v358 = vpop.f32.mrf.mxu0
    %v359 = vpop.f32.mrf.mxu0
    %v360 = vpop.f32.mrf.mxu0
    %361 = vdwg.mxu0
    %v362 = vadd.f32 %v176, %v349
    %v363 = vadd.f32 %v181, %v352
    %v364 = vadd.f32 %v184, %v357
    %v365 = vxor.u32 %v362, 2147483648
    %v366 = vxor.u32 %v363, 2147483648
    %v367 = vxor.u32 %v364, 2147483648
    %v368 = vmul.f32 %v365, 1.442695
    %v369 = vpow.pop %v368
    %v370 = vmul.f32 %v366, 1.442695
    %v371 = vpow.pop %v370
    %v372 = vmul.f32 %v367, 1.442695
    %v373 = vpow.pop %v372
    %v374 = vadd.f32 %v369, 1.0
    %v375 = vadd.f32 %v371, 1.0
    %v376 = vadd.f32 %v373, 1.0
    %v377 = vrcp.pop %v374
    %v378 = vmul.f32 1.0, %v377
    %v379 = vrcp.pop %v375
    %v380 = vmul.f32 1.0, %v379
    %v381 = vrcp.pop %v376
    %v382 = vmul.f32 1.0, %v381
    %v383 = vtanh.pop %v362
    %v384 = vtanh.pop %v363
    %v385 = vtanh.pop %v364
    %v386 = vmul.f32 %v378, %v266
    %v387 = vmul.f32 %v380, %v267
    %v388 = vmul.f32 %v382, %v268
    %392 = vrot.lane.b32.xlu0 %v383, 64
    %v393 = vpop.permute.xlu0 %392
    %394 = vrot.lane.b32.xlu0 %v384, 64
    %v395 = vpop.permute.xlu0 %394
    %396 = vrot.lane.b32.xlu0 %v385, 64
    %v397 = vpop.permute.xlu0 %396
    %v401 = vmul.f32 %v378, %v393
    %v402 = vmul.f32 %v380, %v395
    %v403 = vmul.f32 %v382, %v397
    %407 = vrot.lane.b32.xlu0 %v401, 32
    %v408 = vpop.permute.xlu0 %407
    %409 = vrot.lane.b32.xlu0 %v402, 32
    %v410 = vpop.permute.xlu0 %409
    %411 = vrot.lane.b32.xlu0 %v403, 32
    %v412 = vpop.permute.xlu0 %411
    %v416 = vadd.f32 %v386, %v408
    %v417 = vadd.f32 %v387, %v410
    %v418 = vadd.f32 %v388, %v412
    %v419 = vtanh.pop %v416
    %v420 = vtanh.pop %v417
    %v421 = vtanh.pop %v418
    %425 = vrot.lane.b32.xlu0 %v419, 64
    %v426 = vpop.permute.xlu0 %425
    %427 = vrot.lane.b32.xlu0 %v420, 64
    %v428 = vpop.permute.xlu0 %427
    %429 = vrot.lane.b32.xlu0 %v421, 64
    %v430 = vpop.permute.xlu0 %429
    %v434 = vmul.f32 %v378, %v426
    %v435 = vmul.f32 %v380, %v428
    %v436 = vmul.f32 %v382, %v430
    %v437 = vpack.c.bf16 %v435, %v434
    %v438 = vpack.c.bf16 %v436, %v436
    %441 = vrot.lane.b32.xlu0 %v437, 32
    %v442 = vpop.permute.xlu0 %441
    %443 = vrot.lane.b32.xlu0 %v438, 32
    %v444 = vpop.permute.xlu0 %443
    %v446 = vsel %vm307, %v442, 0
    %v449 = vsel %vm307, %v444, 0
    %451 = vmatprep.subr.bf16.mxu0 0
    %452 = vmatpush1.bf16.msra.mxu0 0
    %453 = vmatprep.subr.bf16.mxu0 0
    %454 = vmatpush1.bf16.msra.mxu0 0
    %455 = vmatprep.subr.bf16.mxu0 0
    %456 = vmatpush1.bf16.msra.mxu0 0
    %457 = vmatprep.subr.bf16.mxu0 0
    %458 = vmatpush1.bf16.msra.mxu0 0
    %459 = vmatprep.subr.bf16.mxu0 0
    %460 = vmatpush1.bf16.msra.mxu0 0
    %461 = vmatprep.subr.bf16.mxu0 0
    %462 = vmatpush1.bf16.msra.mxu0 0
    %463 = vmatprep.subr.bf16.mxu0 0
    %464 = vmatpush1.bf16.msra.mxu0 %v304
    %465 = vmatprep.subr.bf16.mxu0 0
    %466 = vmatpush1.bf16.msra.mxu0 %v303
    %467 = vmatprep.subr.bf16.mxu0 0
    %468 = vmatpush2.bf16.msra.mxu0 0
    %469 = vmatprep.subr.bf16.mxu0 0
    %470 = vmatpush2.bf16.msra.mxu0 0
    %471 = vmatprep.subr.bf16.mxu0 0
    %472 = vmatpush2.bf16.msra.mxu0 0
    %473 = vmatprep.subr.bf16.mxu0 0
    %474 = vmatpush2.bf16.msra.mxu0 0
    %475 = vmatprep.subr.bf16.mxu0 0
    %476 = vmatpush2.bf16.msra.mxu0 0
    %477 = vmatprep.subr.bf16.mxu0 0
    %478 = vmatpush2.bf16.msra.mxu0 0
    %479 = vmatprep.subr.bf16.mxu0 0
    %480 = vmatpush2.bf16.msra.mxu0 0
    %481 = vmatprep.subr.bf16.mxu0 0
    %482 = vmatpush2.bf16.msra.mxu0 0
    %483 = vmatprep.mubr.bf16.mxu0 0
    %484 = vmatmul.mubr.bf16.gmra.mxu0 %v446
    %v485 = vpop.f32.mrf.mxu0
    %v486 = vadd.f32 0.0, %v485
    %v487 = vpop.f32.mrf.mxu0
    %v488 = vpop.f32.mrf.mxu0
    %v489 = vadd.f32 0.0, %v488
    %v490 = vpop.f32.mrf.mxu0
    %491 = vmatprep.mubr.bf16.mxu0 0
    %492 = vmatmul.mubr.bf16.gmra.mxu0 %v449
    %v493 = vpop.f32.mrf.mxu0
    %v494 = vadd.f32 0.0, %v493
    %v495 = vpop.f32.mrf.mxu0
    %v496 = vpop.f32.mrf.mxu0
    %v497 = vpop.f32.mrf.mxu0
    %498 = vdwg.mxu0
    %v499 = vadd.f32 %v189, %v486
    %v500 = vadd.f32 %v192, %v489
    %v501 = vadd.f32 %v197, %v494
    %v502 = vxor.u32 %v499, 2147483648
    %v503 = vxor.u32 %v500, 2147483648
    %v504 = vxor.u32 %v501, 2147483648
    %v505 = vmul.f32 %v502, 1.442695
    %v506 = vpow.pop %v505
    %v507 = vmul.f32 %v503, 1.442695
    %v508 = vpow.pop %v507
    %v509 = vmul.f32 %v504, 1.442695
    %v510 = vpow.pop %v509
    %v511 = vadd.f32 %v506, 1.0
    %v512 = vadd.f32 %v508, 1.0
    %v513 = vadd.f32 %v510, 1.0
    %v514 = vrcp.pop %v511
    %v515 = vmul.f32 1.0, %v514
    %v516 = vrcp.pop %v512
    %v517 = vmul.f32 1.0, %v516
    %v518 = vrcp.pop %v513
    %v519 = vmul.f32 1.0, %v518
    %v520 = vtanh.pop %v499
    %v521 = vtanh.pop %v500
    %v522 = vtanh.pop %v501
    %v523 = vmul.f32 %v515, %v416
    %v524 = vmul.f32 %v517, %v417
    %v525 = vmul.f32 %v519, %v418
    %529 = vrot.lane.b32.xlu0 %v520, 64
    %v530 = vpop.permute.xlu0 %529
    %531 = vrot.lane.b32.xlu0 %v521, 64
    %v532 = vpop.permute.xlu0 %531
    %533 = vrot.lane.b32.xlu0 %v522, 64
    %v534 = vpop.permute.xlu0 %533
    %v538 = vmul.f32 %v515, %v530
    %v539 = vmul.f32 %v517, %v532
    %v540 = vmul.f32 %v519, %v534
    %544 = vrot.lane.b32.xlu0 %v538, 32
    %v545 = vpop.permute.xlu0 %544
    %546 = vrot.lane.b32.xlu0 %v539, 32
    %v547 = vpop.permute.xlu0 %546
    %548 = vrot.lane.b32.xlu0 %v540, 32
    %v549 = vpop.permute.xlu0 %548
    %v553 = vadd.f32 %v523, %v545
    %v554 = vadd.f32 %v524, %v547
    %v555 = vadd.f32 %v525, %v549
    %v556 = vtanh.pop %v553
    %v557 = vtanh.pop %v554
    %v558 = vtanh.pop %v555
    %562 = vrot.lane.b32.xlu0 %v556, 64
    %v563 = vpop.permute.xlu0 %562
    %564 = vrot.lane.b32.xlu0 %v557, 64
    %v565 = vpop.permute.xlu0 %564
    %566 = vrot.lane.b32.xlu0 %v558, 64
    %v567 = vpop.permute.xlu0 %566
    %v571 = vmul.f32 %v515, %v563
    %v572 = vmul.f32 %v517, %v565
    %v573 = vmul.f32 %v519, %v567
    %v574 = vpack.c.bf16 %v572, %v571
    %v575 = vpack.c.bf16 %v573, %v573
    %578 = vrot.lane.b32.xlu0 %v574, 32
    %v579 = vpop.permute.xlu0 %578
    %580 = vrot.lane.b32.xlu0 %v575, 32
    %v581 = vpop.permute.xlu0 %580
    %v583 = vsel %vm307, %v579, 0
    %v586 = vsel %vm307, %v581, 0
    %588 = vmatprep.subr.bf16.mxu0 0
    %589 = vmatpush1.bf16.msra.mxu0 0
    %590 = vmatprep.subr.bf16.mxu0 0
    %591 = vmatpush1.bf16.msra.mxu0 0
    %592 = vmatprep.subr.bf16.mxu0 0
    %593 = vmatpush1.bf16.msra.mxu0 0
    %594 = vmatprep.subr.bf16.mxu0 0
    %595 = vmatpush1.bf16.msra.mxu0 0
    %596 = vmatprep.subr.bf16.mxu0 0
    %597 = vmatpush1.bf16.msra.mxu0 0
    %598 = vmatprep.subr.bf16.mxu0 0
    %599 = vmatpush1.bf16.msra.mxu0 0
    %600 = vmatprep.subr.bf16.mxu0 0
    %601 = vmatpush1.bf16.msra.mxu0 %v304
    %602 = vmatprep.subr.bf16.mxu0 0
    %603 = vmatpush1.bf16.msra.mxu0 %v303
    %604 = vmatprep.subr.bf16.mxu0 0
    %605 = vmatpush2.bf16.msra.mxu0 0
    %606 = vmatprep.subr.bf16.mxu0 0
    %607 = vmatpush2.bf16.msra.mxu0 0
    %608 = vmatprep.subr.bf16.mxu0 0
    %609 = vmatpush2.bf16.msra.mxu0 0
    %610 = vmatprep.subr.bf16.mxu0 0
    %611 = vmatpush2.bf16.msra.mxu0 0
    %612 = vmatprep.subr.bf16.mxu0 0
    %613 = vmatpush2.bf16.msra.mxu0 0
    %614 = vmatprep.subr.bf16.mxu0 0
    %615 = vmatpush2.bf16.msra.mxu0 0
    %616 = vmatprep.subr.bf16.mxu0 0
    %617 = vmatpush2.bf16.msra.mxu0 0
    %618 = vmatprep.subr.bf16.mxu0 0
    %619 = vmatpush2.bf16.msra.mxu0 0
    %620 = vmatprep.mubr.bf16.mxu0 0
    %621 = vmatmul.mubr.bf16.gmra.mxu0 %v583
    %v622 = vpop.f32.mrf.mxu0
    %v623 = vadd.f32 0.0, %v622
    %v624 = vpop.f32.mrf.mxu0
    %v625 = vpop.f32.mrf.mxu0
    %v626 = vadd.f32 0.0, %v625
    %v627 = vpop.f32.mrf.mxu0
    %628 = vmatprep.mubr.bf16.mxu0 0
    %629 = vmatmul.mubr.bf16.gmra.mxu0 %v586
    %v630 = vpop.f32.mrf.mxu0
    %v631 = vadd.f32 0.0, %v630
    %v632 = vpop.f32.mrf.mxu0
    %v633 = vpop.f32.mrf.mxu0
    %v634 = vpop.f32.mrf.mxu0
    %635 = vdwg.mxu0
    %v636 = vadd.f32 %v200, %v623
    %v637 = vadd.f32 %v205, %v626
    %v638 = vadd.f32 %v208, %v631
    %v639 = vxor.u32 %v636, 2147483648
    %v640 = vxor.u32 %v637, 2147483648
    %v641 = vxor.u32 %v638, 2147483648
    %v642 = vmul.f32 %v639, 1.442695
    %v643 = vpow.pop %v642
    %v644 = vmul.f32 %v640, 1.442695
    %v645 = vpow.pop %v644
    %v646 = vmul.f32 %v641, 1.442695
    %v647 = vpow.pop %v646
    %v648 = vadd.f32 %v643, 1.0
    %v649 = vadd.f32 %v645, 1.0
    %v650 = vadd.f32 %v647, 1.0
    %v651 = vrcp.pop %v648
    %v652 = vmul.f32 1.0, %v651
    %v653 = vrcp.pop %v649
    %v654 = vmul.f32 1.0, %v653
    %v655 = vrcp.pop %v650
    %v656 = vmul.f32 1.0, %v655
    %v657 = vtanh.pop %v636
    %v658 = vtanh.pop %v637
    %v659 = vtanh.pop %v638
    %v660 = vmul.f32 %v652, %v553
    %v661 = vmul.f32 %v654, %v554
    %v662 = vmul.f32 %v656, %v555
    %666 = vrot.lane.b32.xlu0 %v657, 64
    %v667 = vpop.permute.xlu0 %666
    %668 = vrot.lane.b32.xlu0 %v658, 64
    %v669 = vpop.permute.xlu0 %668
    %670 = vrot.lane.b32.xlu0 %v659, 64
    %v671 = vpop.permute.xlu0 %670
    %v675 = vmul.f32 %v652, %v667
    %v676 = vmul.f32 %v654, %v669
    %v677 = vmul.f32 %v656, %v671
    %681 = vrot.lane.b32.xlu0 %v675, 32
    %v682 = vpop.permute.xlu0 %681
    %683 = vrot.lane.b32.xlu0 %v676, 32
    %v684 = vpop.permute.xlu0 %683
    %685 = vrot.lane.b32.xlu0 %v677, 32
    %v686 = vpop.permute.xlu0 %685
    %v690 = vadd.f32 %v660, %v682
    %v691 = vadd.f32 %v661, %v684
    %v692 = vadd.f32 %v662, %v686
    %v693 = vtanh.pop %v690
    %v694 = vtanh.pop %v691
    %v695 = vtanh.pop %v692
    %699 = vrot.lane.b32.xlu0 %v693, 64
    %v700 = vpop.permute.xlu0 %699
    %701 = vrot.lane.b32.xlu0 %v694, 64
    %v702 = vpop.permute.xlu0 %701
    %703 = vrot.lane.b32.xlu0 %v695, 64
    %v704 = vpop.permute.xlu0 %703
    %v708 = vmul.f32 %v652, %v700
    %v709 = vmul.f32 %v654, %v702
    %v710 = vmul.f32 %v656, %v704
    %v711 = vpack.c.bf16 %v709, %v708
    %v712 = vpack.c.bf16 %v710, %v710
    %v713 = vld [vmem:[%s6] sm:$0xf]
    %v714 = vld [vmem:[%s6 + $0x4] sm:$0xf]
    %v715 = vld [vmem:[%s6 + $0x8] sm:$0xf]
    %v716 = vld [vmem:[%s6 + $0xc] sm:$0xf]
    %v717 = vld [vmem:[%s7] sm:$0x1]
    %v719 = vlaneseq
    %v720 = vshrl.u32 %v719, 7
    %v721 = vsub.s32 0, %v720
    %v722 = vrot.slane %v717, %v721
    %726 = vrot.lane.b32.xlu0 %v711, 32
    %v727 = vpop.permute.xlu0 %726
    %728 = vrot.lane.b32.xlu0 %v712, 32
    %v729 = vpop.permute.xlu0 %728
    %v734 = vunpack.c.l.b16 %v713
    %v735 = vunpack.c.l.b16 %v714
    %v736 = vunpack.c.l.b16 %v715
    %v737 = vunpack.c.l.b16 %v716
    %v738 = vpack.c.b16 %v735, %v734
    %v739 = vpack.c.b16 %v737, %v736
    %v743 = vsel %vm307, %v727, 0
    %v746 = vsel %vm307, %v729, 0
    %748 = vmatprep.subr.bf16.mxu0 0
    %749 = vmatpush1.bf16.msra.mxu0 0
    %750 = vmatprep.subr.bf16.mxu0 0
    %751 = vmatpush1.bf16.msra.mxu0 0
    %752 = vmatprep.subr.bf16.mxu0 0
    %753 = vmatpush1.bf16.msra.mxu0 0
    %754 = vmatprep.subr.bf16.mxu0 0
    %755 = vmatpush1.bf16.msra.mxu0 0
    %756 = vmatprep.subr.bf16.mxu0 0
    %757 = vmatpush1.bf16.msra.mxu0 0
    %758 = vmatprep.subr.bf16.mxu0 0
    %759 = vmatpush1.bf16.msra.mxu0 0
    %760 = vmatprep.subr.bf16.mxu0 0
    %761 = vmatpush1.bf16.msra.mxu0 %v739
    %762 = vmatprep.subr.bf16.mxu0 0
    %763 = vmatpush1.bf16.msra.mxu0 %v738
    %764 = vmatprep.subr.bf16.mxu0 0
    %765 = vmatpush2.bf16.msra.mxu0 0
    %766 = vmatprep.subr.bf16.mxu0 0
    %767 = vmatpush2.bf16.msra.mxu0 0
    %768 = vmatprep.subr.bf16.mxu0 0
    %769 = vmatpush2.bf16.msra.mxu0 0
    %770 = vmatprep.subr.bf16.mxu0 0
    %771 = vmatpush2.bf16.msra.mxu0 0
    %772 = vmatprep.subr.bf16.mxu0 0
    %773 = vmatpush2.bf16.msra.mxu0 0
    %774 = vmatprep.subr.bf16.mxu0 0
    %775 = vmatpush2.bf16.msra.mxu0 0
    %776 = vmatprep.subr.bf16.mxu0 0
    %777 = vmatpush2.bf16.msra.mxu0 0
    %778 = vmatprep.subr.bf16.mxu0 0
    %779 = vmatpush2.bf16.msra.mxu0 0
    %780 = vmatprep.mubr.bf16.mxu0 0
    %781 = vmatmul.mubr.bf16.gmra.mxu0 %v743
    %v782 = vpop.f32.mrf.mxu0
    %v783 = vadd.f32 %v722, %v782
    %v784 = vpop.f32.mrf.mxu0
    %v785 = vpop.f32.mrf.mxu0
    %v786 = vadd.f32 %v722, %v785
    %v787 = vpop.f32.mrf.mxu0
    %788 = vmatprep.mubr.bf16.mxu0 0
    %789 = vmatmul.mubr.bf16.gmra.mxu0 %v746
    %v790 = vpop.f32.mrf.mxu0
    %v791 = vadd.f32 %v722, %v790
    %v792 = vpop.f32.mrf.mxu0
    %v793 = vpop.f32.mrf.mxu0
    %v794 = vpop.f32.mrf.mxu0
    %795 = vdwg.mxu0
    %v796 = vmax.f32 %v783, 0.0
    %v797 = vmax.f32 %v786, 0.0
    %v798 = vmax.f32 %v791, 0.0
    %v799 = vld [vmem:[%s8] sm:$0x1]
    %v800 = vld [vmem:[%s9] sm:$0x1]
    %vm801 = vcmask 130048
    %v802 = vsel %vm801, %v796, 0.0
    %v803 = vsel %vm801, %v797, 0.0
    %v804 = vadd.f32 %v802, %v803
    %v805 = vsel %vm801, %v798, 0.0
    %v806 = vadd.f32 %v804, %v805
    %v807 = vrot.slane %v806, 4
    %v808 = vadd.f32 %v806, %v807
    %v809 = vrot.slane %v808, 2
    %v810 = vadd.f32 %v808, %v809
    %v811 = vrot.slane %v810, 1
    %v812 = vadd.f32 %v810, %v811
    %v813 = vrcp.pop 24.0
    %v814 = vmul.f32 %v812, %v813
    %v815 = vsub.f32 %v796, %v814
    %v816 = vsub.f32 %v797, %v814
    %v817 = vsub.f32 %v798, %v814
    %v818 = vmul.f32 %v815, %v815
    %v819 = vmul.f32 %v816, %v816
    %v820 = vmul.f32 %v817, %v817
    %v821 = vsel %vm801, %v818, 0.0
    %v822 = vsel %vm801, %v819, 0.0
    %v823 = vadd.f32 %v821, %v822
    %v824 = vsel %vm801, %v820, 0.0
    %v825 = vadd.f32 %v823, %v824
    %v826 = vrot.slane %v825, 4
    %v827 = vadd.f32 %v825, %v826
    %v828 = vrot.slane %v827, 2
    %v829 = vadd.f32 %v827, %v828
    %v830 = vrot.slane %v829, 1
    %v831 = vadd.f32 %v829, %v830
    %v832 = vmul.f32 %v831, %v813
    %v833 = vadd.f32 %v832, 1e-05
    %v834 = vrsqrt.pop %v833
    %v835 = vmul.f32 %v815, %v834
    %v836 = vmul.f32 %v816, %v834
    %v837 = vmul.f32 %v817, %v834
    %v839 = vlaneseq
    %v840 = vshrl.u32 %v839, 7
    %v841 = vsub.s32 0, %v840
    %v842 = vrot.slane %v799, %v841
    %v844 = vmul.f32 %v835, %v842
    %v845 = vmul.f32 %v836, %v842
    %v846 = vmul.f32 %v837, %v842
    %v848 = vlaneseq
    %v849 = vshrl.u32 %v848, 7
    %v850 = vsub.s32 0, %v849
    %v851 = vrot.slane %v800, %v850
    %v853 = vadd.f32 %v844, %v851
    %v854 = vadd.f32 %v845, %v851
    %v855 = vadd.f32 %v846, %v851
    %v856 = vld [vmem:[%s1] sm:$0xff]
    %v857 = vld [vmem:[%s1 + $0x8] sm:$0xff]
    %v858 = vld [vmem:[%s1 + $0x10] sm:$0xff]
    %v859 = vpack.c.bf16 %v857, %v856
    %v860 = vpack.c.bf16 %v858, %v858
    %v861 = vld [vmem:[%s10] sm:$0xf]
    %v862 = vld [vmem:[%s10 + $0x4] sm:$0xf]
    %v863 = vld [vmem:[%s10 + $0x8] sm:$0xf]
    %v864 = vld [vmem:[%s10 + $0xc] sm:$0xf]
    %v865 = vld [vmem:[%s10 + $0x10] sm:$0xf]
    %v866 = vld [vmem:[%s10 + $0x14] sm:$0xf]
    %v867 = vld [vmem:[%s10 + $0x18] sm:$0xf]
    %v868 = vld [vmem:[%s10 + $0x1c] sm:$0x3]
    %v869 = vpack.c.bf16 %v854, %v853
    %v870 = vpack.c.bf16 %v855, %v855
    %v871 = vld [vmem:[%s11] sm:$0xf]
    %v872 = vld [vmem:[%s11 + $0x4] sm:$0xf]
    %v875 = vunpack.c.l.b16 %v871
    %v876 = vunpack.c.l.b16 %v872
    %v877 = vpack.c.b16 %v876, %v875
    %v880 = vsel %vm801, %v869, 0
    %v883 = vsel %vm801, %v870, 0
    %885 = vmatprep.subr.bf16.mxu0 0
    %886 = vmatpush1.bf16.msra.mxu0 0
    %887 = vmatprep.subr.bf16.mxu0 0
    %888 = vmatpush1.bf16.msra.mxu0 0
    %889 = vmatprep.subr.bf16.mxu0 0
    %890 = vmatpush1.bf16.msra.mxu0 0
    %891 = vmatprep.subr.bf16.mxu0 0
    %892 = vmatpush1.bf16.msra.mxu0 0
    %893 = vmatprep.subr.bf16.mxu0 0
    %894 = vmatpush1.bf16.msra.mxu0 0
    %895 = vmatprep.subr.bf16.mxu0 0
    %896 = vmatpush1.bf16.msra.mxu0 0
    %897 = vmatprep.subr.bf16.mxu0 0
    %898 = vmatpush1.bf16.msra.mxu0 0
    %899 = vmatprep.subr.bf16.mxu0 0
    %900 = vmatpush1.bf16.msra.mxu0 %v877
    %901 = vmatprep.subr.bf16.mxu0 0
    %902 = vmatpush2.bf16.msra.mxu0 0
    %903 = vmatprep.subr.bf16.mxu0 0
    %904 = vmatpush2.bf16.msra.mxu0 0
    %905 = vmatprep.subr.bf16.mxu0 0
    %906 = vmatpush2.bf16.msra.mxu0 0
    %907 = vmatprep.subr.bf16.mxu0 0
    %908 = vmatpush2.bf16.msra.mxu0 0
    %909 = vmatprep.subr.bf16.mxu0 0
    %910 = vmatpush2.bf16.msra.mxu0 0
    %911 = vmatprep.subr.bf16.mxu0 0
    %912 = vmatpush2.bf16.msra.mxu0 0
    %913 = vmatprep.subr.bf16.mxu0 0
    %914 = vmatpush2.bf16.msra.mxu0 0
    %915 = vmatprep.subr.bf16.mxu0 0
    %916 = vmatpush2.bf16.msra.mxu0 0
    %917 = vmatprep.mubr.bf16.mxu0 0
    %918 = vmatmul.mubr.bf16.gmra.mxu0 %v880
    %v919 = vpop.f32.mrf.mxu0
    %v920 = vadd.f32 0.0, %v919
    %v921 = vpop.f32.mrf.mxu0
    %v922 = vpop.f32.mrf.mxu0
    %v923 = vadd.f32 0.0, %v922
    %v924 = vpop.f32.mrf.mxu0
    %925 = vmatprep.mubr.bf16.mxu0 0
    %926 = vmatmul.mubr.bf16.gmra.mxu0 %v883
    %v927 = vpop.f32.mrf.mxu0
    %v928 = vadd.f32 0.0, %v927
    %v929 = vpop.f32.mrf.mxu0
    %v930 = vpop.f32.mrf.mxu0
    %v931 = vpop.f32.mrf.mxu0
    %932 = vdwg.mxu0
    %v941 = vunpack.c.l.b16 %v861
    %v942 = vunpack.c.l.b16 %v862
    %v943 = vunpack.c.l.b16 %v863
    %v944 = vunpack.c.l.b16 %v864
    %v945 = vunpack.c.l.b16 %v865
    %v946 = vunpack.c.l.b16 %v866
    %v947 = vunpack.c.l.b16 %v867
    %v948 = vunpack.c.l.b16 %v868
    %v949 = vpack.c.b16 %v942, %v941
    %v950 = vpack.c.b16 %v944, %v943
    %v951 = vpack.c.b16 %v946, %v945
    %v952 = vpack.c.b16 %v948, %v947
    %vm956 = vcmask 490496
    %v958 = vsel %vm956, %v859, 0
    %v961 = vsel %vm956, %v860, 0
    %vm963 = vcmask 1045504
    %v965 = vsel %vm963, %v952, 0
    %967 = vmatprep.subr.bf16.mxu0 0
    %968 = vmatpush1.bf16.msra.mxu0 0
    %969 = vmatprep.subr.bf16.mxu0 0
    %970 = vmatpush1.bf16.msra.mxu0 0
    %971 = vmatprep.subr.bf16.mxu0 0
    %972 = vmatpush1.bf16.msra.mxu0 0
    %973 = vmatprep.subr.bf16.mxu0 0
    %974 = vmatpush1.bf16.msra.mxu0 0
    %975 = vmatprep.subr.bf16.mxu0 0
    %976 = vmatpush1.bf16.msra.mxu0 %v965
    %977 = vmatprep.subr.bf16.mxu0 0
    %978 = vmatpush1.bf16.msra.mxu0 %v951
    %979 = vmatprep.subr.bf16.mxu0 0
    %980 = vmatpush1.bf16.msra.mxu0 %v950
    %981 = vmatprep.subr.bf16.mxu0 0
    %982 = vmatpush1.bf16.msra.mxu0 %v949
    %983 = vmatprep.subr.bf16.mxu0 0
    %984 = vmatpush2.bf16.msra.mxu0 0
    %985 = vmatprep.subr.bf16.mxu0 0
    %986 = vmatpush2.bf16.msra.mxu0 0
    %987 = vmatprep.subr.bf16.mxu0 0
    %988 = vmatpush2.bf16.msra.mxu0 0
    %989 = vmatprep.subr.bf16.mxu0 0
    %990 = vmatpush2.bf16.msra.mxu0 0
    %991 = vmatprep.subr.bf16.mxu0 0
    %992 = vmatpush2.bf16.msra.mxu0 0
    %993 = vmatprep.subr.bf16.mxu0 0
    %994 = vmatpush2.bf16.msra.mxu0 0
    %995 = vmatprep.subr.bf16.mxu0 0
    %996 = vmatpush2.bf16.msra.mxu0 0
    %997 = vmatprep.subr.bf16.mxu0 0
    %998 = vmatpush2.bf16.msra.mxu0 0
    %999 = vmatprep.mubr.bf16.mxu0 0
    %1000 = vmatmul.mubr.bf16.gmra.mxu0 %v958
    %v1001 = vpop.f32.mrf.mxu0
    %v1002 = vadd.f32 %v920, %v1001
    %v1003 = vpop.f32.mrf.mxu0
    %v1004 = vpop.f32.mrf.mxu0
    %v1005 = vadd.f32 %v923, %v1004
    %v1006 = vpop.f32.mrf.mxu0
    %1007 = vmatprep.mubr.bf16.mxu0 0
    %1008 = vmatmul.mubr.bf16.gmra.mxu0 %v961
    %v1009 = vpop.f32.mrf.mxu0
    %v1010 = vadd.f32 %v928, %v1009
    %v1011 = vpop.f32.mrf.mxu0
    %v1012 = vpop.f32.mrf.mxu0
    %v1013 = vpop.f32.mrf.mxu0
    %1014 = vdwg.mxu0
    %v1015 = vld [vmem:[%s13] sm:$0x1]
    %v1017 = vlaneseq
    %v1018 = vshrl.u32 %v1017, 7
    %v1019 = vsub.s32 0, %v1018
    %v1020 = vrot.slane %v1015, %v1019
    %v1022 = vadd.f32 %v1002, %v1020
    %v1023 = vadd.f32 %v1005, %v1020
    %v1024 = vadd.f32 %v1010, %v1020
    %v1025 = vld [vmem:[%s12] sm:$0xf]
    %v1026 = vld [vmem:[%s12 + $0x4] sm:$0xf]
    %v1027 = vld [vmem:[%s12 + $0x8] sm:$0xf]
    %v1028 = vld [vmem:[%s12 + $0xc] sm:$0xf]
    %v1029 = vlaneseq
    %v1030 = vand.u32 %v1029, 127
    %v1031 = vadd.s32 %v1030, 1
    %v1032 = vld [vmem:[%s2] sm:$0xff]
    %1033 = vset.pattern.permute.xlu0 0
    %1034 = vperm.xlu0 %1033, %v1032
    %v1035 = vpop.permute.xlu0 %1034
    %vm1036 = vcmp.eq.s32.totalorder %v1035, %v1031
    %v1037 = vsel %vm1036, 1, 0
    %v1038 = vcvt.s32.f32 %v1037
    %1039 = vset.pattern.permute.xlu0 1
    %1040 = vperm.xlu0 %1039, %v1032
    %v1041 = vpop.permute.xlu0 %1040
    %vm1042 = vcmp.eq.s32.totalorder %v1041, %v1031
    %v1043 = vsel %vm1042, 1, 0
    %v1044 = vcvt.s32.f32 %v1043
    %v1045 = vadd.f32 %v1038, %v1044
    %v1046 = vmul.f32 %v1045, 0.5
    %s1047 = scalar_lea.vmem %s2, 8
    %v1048 = vld [vmem:[%s1047] sm:$0xff]
    %1049 = vset.pattern.permute.xlu0 0
    %1050 = vperm.xlu0 %1049, %v1048
    %v1051 = vpop.permute.xlu0 %1050
    %vm1052 = vcmp.eq.s32.totalorder %v1051, %v1031
    %v1053 = vsel %vm1052, 1, 0
    %v1054 = vcvt.s32.f32 %v1053
    %1055 = vset.pattern.permute.xlu0 1
    %1056 = vperm.xlu0 %1055, %v1048
    %v1057 = vpop.permute.xlu0 %1056
    %vm1058 = vcmp.eq.s32.totalorder %v1057, %v1031
    %v1059 = vsel %vm1058, 1, 0
    %v1060 = vcvt.s32.f32 %v1059
    %v1061 = vadd.f32 %v1054, %v1060
    %v1062 = vmul.f32 %v1061, 0.5
    %v1063 = vxor.u32 %v1024, 2147483648
    %v1064 = vmul.f32 %v1063, 1.442695
    %v1065 = vpow.pop %v1064
    %v1066 = vadd.f32 %v1065, 1.0
    %v1067 = vrcp.pop %v1066
    %v1068 = vmul.f32 1.0, %v1067
    %v1069 = vtanh.pop %v1024
    %v1070 = vmul.f32 %v1068, 0.0
    %1072 = vrot.lane.b32.xlu0 %v1069, 64
    %v1073 = vpop.permute.xlu0 %1072
    %v1075 = vmul.f32 %v1068, %v1073
    %1077 = vrot.lane.b32.xlu0 %v1075, 32
    %v1078 = vpop.permute.xlu0 %1077
    %v1080 = vadd.f32 %v1070, %v1078
    %v1081 = vtanh.pop %v1080
    %1083 = vrot.lane.b32.xlu0 %v1081, 64
    %v1084 = vpop.permute.xlu0 %1083
    %v1086 = vmul.f32 %v1068, %v1084
    %1088 = vrot.lane.b32.xlu0 %v1086, 32
    %v1089 = vpop.permute.xlu0 %1088
    %v1091 = vsel %vm307, %v1089, %v1080
    %v1093 = vsel %vm107, %v1062, 0
    %1095 = vmatprep.subr.mxu0 0.0
    %1096 = vmatpush1.msra.mxu0 0.0
    %1097 = vmatprep.subr.mxu0 0.0
    %1098 = vmatpush1.msra.mxu0 0.0
    %1099 = vmatprep.subr.mxu0 0.0
    %1100 = vmatpush1.msra.mxu0 0.0
    %1101 = vmatprep.subr.mxu0 0.0
    %1102 = vmatpush1.msra.mxu0 0.0
    %1103 = vmatprep.subr.mxu0 0.0
    %1104 = vmatpush1.msra.mxu0 0.0
    %1105 = vmatprep.subr.mxu0 0.0
    %1106 = vmatpush1.msra.mxu0 0.0
    %1107 = vmatprep.subr.mxu0 0.0
    %1108 = vmatpush1.msra.mxu0 0.0
    %1109 = vmatprep.subr.mxu0 0.0
    %1110 = vmatpush1.msra.mxu0 0.0
    %1111 = vmatprep.subr.mxu0 0.0
    %1112 = vmatpush1.msra.mxu0 0.0
    %1113 = vmatprep.subr.mxu0 0.0
    %1114 = vmatpush1.msra.mxu0 0.0
    %1115 = vmatprep.subr.mxu0 0.0
    %1116 = vmatpush1.msra.mxu0 0.0
    %1117 = vmatprep.subr.mxu0 0.0
    %1118 = vmatpush1.msra.mxu0 0.0
    %1119 = vmatprep.subr.mxu0 0.0
    %1120 = vmatpush1.msra.mxu0 0.0
    %1121 = vmatprep.subr.mxu0 0.0
    %1122 = vmatpush1.msra.mxu0 0.0
    %1123 = vmatprep.subr.mxu0 0.0
    %1124 = vmatpush1.msra.mxu0 0.0
    %1125 = vmatprep.subr.mxu0 0.0
    %1126 = vmatpush1.msra.mxu0 %v1091
    %1127 = vmatprep.subr.mxu0 0.0
    %1128 = vmatpush2.msra.mxu0 0.0
    %1129 = vmatprep.subr.mxu0 0.0
    %1130 = vmatpush2.msra.mxu0 0.0
    %1131 = vmatprep.subr.mxu0 0.0
    %1132 = vmatpush2.msra.mxu0 0.0
    %1133 = vmatprep.subr.mxu0 0.0
    %1134 = vmatpush2.msra.mxu0 0.0
    %1135 = vmatprep.subr.mxu0 0.0
    %1136 = vmatpush2.msra.mxu0 0.0
    %1137 = vmatprep.subr.mxu0 0.0
    %1138 = vmatpush2.msra.mxu0 0.0
    %1139 = vmatprep.subr.mxu0 0.0
    %1140 = vmatpush2.msra.mxu0 0.0
    %1141 = vmatprep.subr.mxu0 0.0
    %1142 = vmatpush2.msra.mxu0 0.0
    %1143 = vmatprep.subr.mxu0 0.0
    %1144 = vmatpush2.msra.mxu0 0.0
    %1145 = vmatprep.subr.mxu0 0.0
    %1146 = vmatpush2.msra.mxu0 0.0
    %1147 = vmatprep.subr.mxu0 0.0
    %1148 = vmatpush2.msra.mxu0 0.0
    %1149 = vmatprep.subr.mxu0 0.0
    %1150 = vmatpush2.msra.mxu0 0.0
    %1151 = vmatprep.subr.mxu0 0.0
    %1152 = vmatpush2.msra.mxu0 0.0
    %1153 = vmatprep.subr.mxu0 0.0
    %1154 = vmatpush2.msra.mxu0 0.0
    %1155 = vmatprep.subr.mxu0 0.0
    %1156 = vmatpush2.msra.mxu0 0.0
    %1157 = vmatprep.subr.mxu0 0.0
    %1158 = vmatpush2.msra.mxu0 0.0
    %1159 = vmatprep.mubr.f32.mxu0 0.0
    %1160 = vmatmul.mubr.f32.gmra.mxu0 %v1093
    %v1161 = vpop.f32.mrf.mxu0
    %v1162 = vadd.f32 0.0, %v1161
    %v1163 = vpop.f32.mrf.mxu0
    %1164 = vdwg.mxu0
    %v1165 = vpack.c.bf16 %v1162, %v1162
    %v1170 = vunpack.c.l.b16 %v1025
    %v1171 = vunpack.c.l.b16 %v1026
    %v1172 = vunpack.c.l.b16 %v1027
    %v1173 = vunpack.c.l.b16 %v1028
    %v1174 = vpack.c.b16 %v1171, %v1170
    %v1175 = vpack.c.b16 %v1173, %v1172
    %v1179 = vsel %vm307, %v1165, 0
    %1181 = vmatprep.subr.bf16.mxu0 0
    %1182 = vmatpush1.bf16.msra.mxu0 0
    %1183 = vmatprep.subr.bf16.mxu0 0
    %1184 = vmatpush1.bf16.msra.mxu0 0
    %1185 = vmatprep.subr.bf16.mxu0 0
    %1186 = vmatpush1.bf16.msra.mxu0 0
    %1187 = vmatprep.subr.bf16.mxu0 0
    %1188 = vmatpush1.bf16.msra.mxu0 0
    %1189 = vmatprep.subr.bf16.mxu0 0
    %1190 = vmatpush1.bf16.msra.mxu0 0
    %1191 = vmatprep.subr.bf16.mxu0 0
    %1192 = vmatpush1.bf16.msra.mxu0 0
    %1193 = vmatprep.subr.bf16.mxu0 0
    %1194 = vmatpush1.bf16.msra.mxu0 %v1175
    %1195 = vmatprep.subr.bf16.mxu0 0
    %1196 = vmatpush1.bf16.msra.mxu0 %v1174
    %1197 = vmatprep.subr.bf16.mxu0 0
    %1198 = vmatpush2.bf16.msra.mxu0 0
    %1199 = vmatprep.subr.bf16.mxu0 0
    %1200 = vmatpush2.bf16.msra.mxu0 0
    %1201 = vmatprep.subr.bf16.mxu0 0
    %1202 = vmatpush2.bf16.msra.mxu0 0
    %1203 = vmatprep.subr.bf16.mxu0 0
    %1204 = vmatpush2.bf16.msra.mxu0 0
    %1205 = vmatprep.subr.bf16.mxu0 0
    %1206 = vmatpush2.bf16.msra.mxu0 0
    %1207 = vmatprep.subr.bf16.mxu0 0
    %1208 = vmatpush2.bf16.msra.mxu0 0
    %1209 = vmatprep.subr.bf16.mxu0 0
    %1210 = vmatpush2.bf16.msra.mxu0 0
    %1211 = vmatprep.subr.bf16.mxu0 0
    %1212 = vmatpush2.bf16.msra.mxu0 0
    %1213 = vmatprep.mubr.bf16.mxu0 0
    %1214 = vmatmul.mubr.bf16.gmra.mxu0 %v1179
    %v1215 = vpop.f32.mrf.mxu0
    %v1216 = vadd.f32 0.0, %v1215
    %v1217 = vpop.f32.mrf.mxu0
    %v1218 = vpop.f32.mrf.mxu0
    %v1219 = vpop.f32.mrf.mxu0
    %1220 = vdwg.mxu0
    %v1221 = vadd.f32 %v1023, %v1216
    %v1222 = vxor.u32 %v1221, 2147483648
    %v1223 = vmul.f32 %v1222, 1.442695
    %v1224 = vpow.pop %v1223
    %v1225 = vadd.f32 %v1224, 1.0
    %v1226 = vrcp.pop %v1225
    %v1227 = vmul.f32 1.0, %v1226
    %v1228 = vtanh.pop %v1221
    %v1229 = vmul.f32 %v1227, %v1162
    %1231 = vrot.lane.b32.xlu0 %v1228, 64
    %v1232 = vpop.permute.xlu0 %1231
    %v1234 = vmul.f32 %v1227, %v1232
    %1236 = vrot.lane.b32.xlu0 %v1234, 32
    %v1237 = vpop.permute.xlu0 %1236
    %v1239 = vadd.f32 %v1229, %v1237
    %v1240 = vtanh.pop %v1239
    %1242 = vrot.lane.b32.xlu0 %v1240, 64
    %v1243 = vpop.permute.xlu0 %1242
    %v1245 = vmul.f32 %v1227, %v1243
    %1247 = vrot.lane.b32.xlu0 %v1245, 32
    %v1248 = vpop.permute.xlu0 %1247
    %v1250 = vsel %vm307, %v1248, %v1239
    %v1252 = vsel %vm107, %v1046, 0
    %1254 = vmatprep.subr.mxu0 0.0
    %1255 = vmatpush1.msra.mxu0 0.0
    %1256 = vmatprep.subr.mxu0 0.0
    %1257 = vmatpush1.msra.mxu0 0.0
    %1258 = vmatprep.subr.mxu0 0.0
    %1259 = vmatpush1.msra.mxu0 0.0
    %1260 = vmatprep.subr.mxu0 0.0
    %1261 = vmatpush1.msra.mxu0 0.0
    %1262 = vmatprep.subr.mxu0 0.0
    %1263 = vmatpush1.msra.mxu0 0.0
    %1264 = vmatprep.subr.mxu0 0.0
    %1265 = vmatpush1.msra.mxu0 0.0
    %1266 = vmatprep.subr.mxu0 0.0
    %1267 = vmatpush1.msra.mxu0 0.0
    %1268 = vmatprep.subr.mxu0 0.0
    %1269 = vmatpush1.msra.mxu0 0.0
    %1270 = vmatprep.subr.mxu0 0.0
    %1271 = vmatpush1.msra.mxu0 0.0
    %1272 = vmatprep.subr.mxu0 0.0
    %1273 = vmatpush1.msra.mxu0 0.0
    %1274 = vmatprep.subr.mxu0 0.0
    %1275 = vmatpush1.msra.mxu0 0.0
    %1276 = vmatprep.subr.mxu0 0.0
    %1277 = vmatpush1.msra.mxu0 0.0
    %1278 = vmatprep.subr.mxu0 0.0
    %1279 = vmatpush1.msra.mxu0 0.0
    %1280 = vmatprep.subr.mxu0 0.0
    %1281 = vmatpush1.msra.mxu0 0.0
    %1282 = vmatprep.subr.mxu0 0.0
    %1283 = vmatpush1.msra.mxu0 0.0
    %1284 = vmatprep.subr.mxu0 0.0
    %1285 = vmatpush1.msra.mxu0 %v1250
    %1286 = vmatprep.subr.mxu0 0.0
    %1287 = vmatpush2.msra.mxu0 0.0
    %1288 = vmatprep.subr.mxu0 0.0
    %1289 = vmatpush2.msra.mxu0 0.0
    %1290 = vmatprep.subr.mxu0 0.0
    %1291 = vmatpush2.msra.mxu0 0.0
    %1292 = vmatprep.subr.mxu0 0.0
    %1293 = vmatpush2.msra.mxu0 0.0
    %1294 = vmatprep.subr.mxu0 0.0
    %1295 = vmatpush2.msra.mxu0 0.0
    %1296 = vmatprep.subr.mxu0 0.0
    %1297 = vmatpush2.msra.mxu0 0.0
    %1298 = vmatprep.subr.mxu0 0.0
    %1299 = vmatpush2.msra.mxu0 0.0
    %1300 = vmatprep.subr.mxu0 0.0
    %1301 = vmatpush2.msra.mxu0 0.0
    %1302 = vmatprep.subr.mxu0 0.0
    %1303 = vmatpush2.msra.mxu0 0.0
    %1304 = vmatprep.subr.mxu0 0.0
    %1305 = vmatpush2.msra.mxu0 0.0
    %1306 = vmatprep.subr.mxu0 0.0
    %1307 = vmatpush2.msra.mxu0 0.0
    %1308 = vmatprep.subr.mxu0 0.0
    %1309 = vmatpush2.msra.mxu0 0.0
    %1310 = vmatprep.subr.mxu0 0.0
    %1311 = vmatpush2.msra.mxu0 0.0
    %1312 = vmatprep.subr.mxu0 0.0
    %1313 = vmatpush2.msra.mxu0 0.0
    %1314 = vmatprep.subr.mxu0 0.0
    %1315 = vmatpush2.msra.mxu0 0.0
    %1316 = vmatprep.subr.mxu0 0.0
    %1317 = vmatpush2.msra.mxu0 0.0
    %1318 = vmatprep.mubr.f32.mxu0 0.0
    %1319 = vmatmul.mubr.f32.gmra.mxu0 %v1252
    %v1320 = vpop.f32.mrf.mxu0
    %v1321 = vadd.f32 0.0, %v1320
    %v1322 = vpop.f32.mrf.mxu0
    %1323 = vdwg.mxu0
    %v1324 = vpack.c.bf16 %v1321, %v1321
    %v1326 = vsel %vm307, %v1324, 0
    %1328 = vmatprep.subr.bf16.mxu0 0
    %1329 = vmatpush1.bf16.msra.mxu0 0
    %1330 = vmatprep.subr.bf16.mxu0 0
    %1331 = vmatpush1.bf16.msra.mxu0 0
    %1332 = vmatprep.subr.bf16.mxu0 0
    %1333 = vmatpush1.bf16.msra.mxu0 0
    %1334 = vmatprep.subr.bf16.mxu0 0
    %1335 = vmatpush1.bf16.msra.mxu0 0
    %1336 = vmatprep.subr.bf16.mxu0 0
    %1337 = vmatpush1.bf16.msra.mxu0 0
    %1338 = vmatprep.subr.bf16.mxu0 0
    %1339 = vmatpush1.bf16.msra.mxu0 0
    %1340 = vmatprep.subr.bf16.mxu0 0
    %1341 = vmatpush1.bf16.msra.mxu0 %v1175
    %1342 = vmatprep.subr.bf16.mxu0 0
    %1343 = vmatpush1.bf16.msra.mxu0 %v1174
    %1344 = vmatprep.subr.bf16.mxu0 0
    %1345 = vmatpush2.bf16.msra.mxu0 0
    %1346 = vmatprep.subr.bf16.mxu0 0
    %1347 = vmatpush2.bf16.msra.mxu0 0
    %1348 = vmatprep.subr.bf16.mxu0 0
    %1349 = vmatpush2.bf16.msra.mxu0 0
    %1350 = vmatprep.subr.bf16.mxu0 0
    %1351 = vmatpush2.bf16.msra.mxu0 0
    %1352 = vmatprep.subr.bf16.mxu0 0
    %1353 = vmatpush2.bf16.msra.mxu0 0
    %1354 = vmatprep.subr.bf16.mxu0 0
    %1355 = vmatpush2.bf16.msra.mxu0 0
    %1356 = vmatprep.subr.bf16.mxu0 0
    %1357 = vmatpush2.bf16.msra.mxu0 0
    %1358 = vmatprep.subr.bf16.mxu0 0
    %1359 = vmatpush2.bf16.msra.mxu0 0
    %1360 = vmatprep.mubr.bf16.mxu0 0
    %1361 = vmatmul.mubr.bf16.gmra.mxu0 %v1326
    %v1362 = vpop.f32.mrf.mxu0
    %v1363 = vadd.f32 0.0, %v1362
    %v1364 = vpop.f32.mrf.mxu0
    %v1365 = vpop.f32.mrf.mxu0
    %v1366 = vpop.f32.mrf.mxu0
    %1367 = vdwg.mxu0
    %v1368 = vadd.f32 %v1022, %v1363
    %v1369 = vxor.u32 %v1368, 2147483648
    %v1370 = vmul.f32 %v1369, 1.442695
    %v1371 = vpow.pop %v1370
    %v1372 = vadd.f32 %v1371, 1.0
    %v1373 = vrcp.pop %v1372
    %v1374 = vmul.f32 1.0, %v1373
    %v1375 = vtanh.pop %v1368
    %v1376 = vmul.f32 %v1374, %v1321
    %1378 = vrot.lane.b32.xlu0 %v1375, 64
    %v1379 = vpop.permute.xlu0 %1378
    %v1381 = vmul.f32 %v1374, %v1379
    %1383 = vrot.lane.b32.xlu0 %v1381, 32
    %v1384 = vpop.permute.xlu0 %1383
    %v1386 = vadd.f32 %v1376, %v1384
    %v1387 = vtanh.pop %v1386
    %1389 = vrot.lane.b32.xlu0 %v1387, 64
    %v1390 = vpop.permute.xlu0 %1389
    %v1392 = vmul.f32 %v1374, %v1390
    %v1393 = vld [vmem:[%s1] sm:$0xff]
    %vm1394 = vcmask 31744
    %v1395 = vsel %vm1394, %v1393, 0.0
    %1396 = vadd.xlane.f32.xlu0 %v1395
    %v1397 = vpop.xlane.xlu0 %1396
    %v1398 = vlaneseq
    %v1399 = vshrl.u32 %v1398, 7
    %v1400 = vcvt.s32.f32 %v1399
    %vm1401 = vcmp.eq.f32.partialorder %v1397, 0.0
    %v1402 = vsel %vm1401, %v1400, 8.0
    %v1403 = vrot.slane %v1402, 4
    %v1404 = vmin.f32 %v1402, %v1403
    %v1405 = vrot.slane %v1404, 2
    %v1406 = vmin.f32 %v1404, %v1405
    %v1407 = vrot.slane %v1406, 1
    %v1408 = vmin.f32 %v1406, %v1407
    %v1409 = vmax.f32 %v1408, 1.0
    %vm1410 = vcmp.lt.f32.partialorder %v1400, %v1409
    %v1411 = vsel %vm1410, 1, 0
    %v1412 = vcvt.s32.f32 %v1411
    %v1413 = vrcp.pop %v1409
    %v1414 = vmul.f32 1.0, %v1413
    %v1415 = vld [vmem:[%s14] sm:$0x1]
    %v1416 = vld [vmem:[%s15] sm:$0x1]
    %v1417 = vmul.f32 %v1392, %v1412
    %vm1418 = vcmask 1048320
    %v1419 = vsel %vm1418, %v1417, 0.0
    %v1420 = vrot.slane %v1419, 4
    %v1421 = vadd.f32 %v1419, %v1420
    %v1422 = vrot.slane %v1421, 2
    %v1423 = vadd.f32 %v1421, %v1422
    %v1424 = vrot.slane %v1423, 1
    %v1425 = vadd.f32 %v1423, %v1424
    %v1426 = vmul.f32 %v1425, %v1414
    %v1427 = vsub.f32 %v1392, %v1426
    %v1428 = vmul.f32 %v1427, %v1412
    %v1429 = vmul.f32 %v1428, %v1428
    %v1430 = vsel %vm1418, %v1429, 0.0
    %v1431 = vrot.slane %v1430, 4
    %v1432 = vadd.f32 %v1430, %v1431
    %v1433 = vrot.slane %v1432, 2
    %v1434 = vadd.f32 %v1432, %v1433
    %v1435 = vrot.slane %v1434, 1
    %v1436 = vadd.f32 %v1434, %v1435
    %v1437 = vmul.f32 %v1436, %v1414
    %v1438 = vadd.f32 %v1437, 1e-05
    %v1439 = vrsqrt.pop %v1438
    %v1440 = vmul.f32 %v1427, %v1439
    %v1442 = vlaneseq
    %v1443 = vshrl.u32 %v1442, 7
    %v1444 = vsub.s32 0, %v1443
    %v1445 = vrot.slane %v1415, %v1444
    %1446 = vrot.lane.b32.xlu0 %v1445, 96
    %v1447 = vpop.permute.xlu0 %1446
    %v1449 = vmul.f32 %v1440, %v1447
    %v1451 = vlaneseq
    %v1452 = vshrl.u32 %v1451, 7
    %v1453 = vsub.s32 0, %v1452
    %v1454 = vrot.slane %v1416, %v1453
    %1455 = vrot.lane.b32.xlu0 %v1454, 96
    %v1456 = vpop.permute.xlu0 %1455
    %v1458 = vadd.f32 %v1449, %v1456
    %v1459 = vpack.c.bf16 %v1458, %v1458
    %v1460 = vld [vmem:[%s16] sm:$0xf]
    %v1461 = vld [vmem:[%s16 + $0x4] sm:$0xf]
    %v1462 = vld [vmem:[%s16 + $0x8] sm:$0xf]
    %v1463 = vld [vmem:[%s16 + $0xc] sm:$0xf]
    %v1464 = vld [vmem:[%s17] sm:$0x1]
    %v1466 = vlaneseq
    %v1467 = vshrl.u32 %v1466, 7
    %v1468 = vsub.s32 0, %v1467
    %v1469 = vrot.slane %v1464, %v1468
    %1472 = vrot.lane.b32.xlu0 %v1459, 32
    %v1473 = vpop.permute.xlu0 %1472
    %v1478 = vunpack.c.l.b16 %v1460
    %v1479 = vunpack.c.l.b16 %v1461
    %v1480 = vunpack.c.l.b16 %v1462
    %v1481 = vunpack.c.l.b16 %v1463
    %v1482 = vpack.c.b16 %v1479, %v1478
    %v1483 = vpack.c.b16 %v1481, %v1480
    %v1487 = vsel %vm307, %v1473, 0
    %1489 = vmatprep.subr.bf16.mxu0 0
    %1490 = vmatpush1.bf16.msra.mxu0 0
    %1491 = vmatprep.subr.bf16.mxu0 0
    %1492 = vmatpush1.bf16.msra.mxu0 0
    %1493 = vmatprep.subr.bf16.mxu0 0
    %1494 = vmatpush1.bf16.msra.mxu0 0
    %1495 = vmatprep.subr.bf16.mxu0 0
    %1496 = vmatpush1.bf16.msra.mxu0 0
    %1497 = vmatprep.subr.bf16.mxu0 0
    %1498 = vmatpush1.bf16.msra.mxu0 0
    %1499 = vmatprep.subr.bf16.mxu0 0
    %1500 = vmatpush1.bf16.msra.mxu0 0
    %1501 = vmatprep.subr.bf16.mxu0 0
    %1502 = vmatpush1.bf16.msra.mxu0 %v1483
    %1503 = vmatprep.subr.bf16.mxu0 0
    %1504 = vmatpush1.bf16.msra.mxu0 %v1482
    %1505 = vmatprep.subr.bf16.mxu0 0
    %1506 = vmatpush2.bf16.msra.mxu0 0
    %1507 = vmatprep.subr.bf16.mxu0 0
    %1508 = vmatpush2.bf16.msra.mxu0 0
    %1509 = vmatprep.subr.bf16.mxu0 0
    %1510 = vmatpush2.bf16.msra.mxu0 0
    %1511 = vmatprep.subr.bf16.mxu0 0
    %1512 = vmatpush2.bf16.msra.mxu0 0
    %1513 = vmatprep.subr.bf16.mxu0 0
    %1514 = vmatpush2.bf16.msra.mxu0 0
    %1515 = vmatprep.subr.bf16.mxu0 0
    %1516 = vmatpush2.bf16.msra.mxu0 0
    %1517 = vmatprep.subr.bf16.mxu0 0
    %1518 = vmatpush2.bf16.msra.mxu0 0
    %1519 = vmatprep.subr.bf16.mxu0 0
    %1520 = vmatpush2.bf16.msra.mxu0 0
    %1521 = vmatprep.mubr.bf16.mxu0 0
    %1522 = vmatmul.mubr.bf16.gmra.mxu0 %v1487
    %v1523 = vpop.f32.mrf.mxu0
    %v1524 = vadd.f32 %v1469, %v1523
    %v1525 = vpop.f32.mrf.mxu0
    %v1526 = vpop.f32.mrf.mxu0
    %v1527 = vpop.f32.mrf.mxu0
    %1528 = vdwg.mxu0
    %v1529 = vmax.f32 %v1524, 0.0
    %v1530 = vld [vmem:[%s18] sm:$0x1]
    %v1531 = vld [vmem:[%s19] sm:$0x1]
    %v1532 = vmul.f32 %v1529, %v1412
    %v1533 = vsel %vm801, %v1532, 0.0
    %v1534 = vrot.slane %v1533, 4
    %v1535 = vadd.f32 %v1533, %v1534
    %v1536 = vrot.slane %v1535, 2
    %v1537 = vadd.f32 %v1535, %v1536
    %v1538 = vrot.slane %v1537, 1
    %v1539 = vadd.f32 %v1537, %v1538
    %v1540 = vmul.f32 %v1539, %v1414
    %v1541 = vsub.f32 %v1529, %v1540
    %v1542 = vmul.f32 %v1541, %v1412
    %v1543 = vmul.f32 %v1542, %v1542
    %v1544 = vsel %vm801, %v1543, 0.0
    %v1545 = vrot.slane %v1544, 4
    %v1546 = vadd.f32 %v1544, %v1545
    %v1547 = vrot.slane %v1546, 2
    %v1548 = vadd.f32 %v1546, %v1547
    %v1549 = vrot.slane %v1548, 1
    %v1550 = vadd.f32 %v1548, %v1549
    %v1551 = vmul.f32 %v1550, %v1414
    %v1552 = vadd.f32 %v1551, 1e-05
    %v1553 = vrsqrt.pop %v1552
    %v1554 = vmul.f32 %v1541, %v1553
    %v1556 = vlaneseq
    %v1557 = vshrl.u32 %v1556, 7
    %v1558 = vsub.s32 0, %v1557
    %v1559 = vrot.slane %v1530, %v1558
    %v1561 = vmul.f32 %v1554, %v1559
    %v1563 = vlaneseq
    %v1564 = vshrl.u32 %v1563, 7
    %v1565 = vsub.s32 0, %v1564
    %v1566 = vrot.slane %v1531, %v1565
    %v1568 = vadd.f32 %v1561, %v1566
    %v1569 = vld [vmem:[%s20] sm:$0xf]
    %v1570 = vld [vmem:[%s20 + $0x4] sm:$0xf]
    %v1571 = vld [vmem:[%s21] sm:$0x1]
    %v1572 = vpack.c.bf16 %v1568, %v1568
    %v1574 = vlaneseq
    %v1575 = vshrl.u32 %v1574, 7
    %v1576 = vsub.s32 0, %v1575
    %v1577 = vrot.slane %v1571, %v1576
    %v1581 = vunpack.c.l.b16 %v1569
    %v1582 = vunpack.c.l.b16 %v1570
    %v1583 = vpack.c.b16 %v1582, %v1581
    %v1586 = vsel %vm801, %v1572, 0
    %1588 = vmatprep.subr.bf16.mxu0 0
    %1589 = vmatpush1.bf16.msra.mxu0 0
    %1590 = vmatprep.subr.bf16.mxu0 0
    %1591 = vmatpush1.bf16.msra.mxu0 0
    %1592 = vmatprep.subr.bf16.mxu0 0
    %1593 = vmatpush1.bf16.msra.mxu0 0
    %1594 = vmatprep.subr.bf16.mxu0 0
    %1595 = vmatpush1.bf16.msra.mxu0 0
    %1596 = vmatprep.subr.bf16.mxu0 0
    %1597 = vmatpush1.bf16.msra.mxu0 0
    %1598 = vmatprep.subr.bf16.mxu0 0
    %1599 = vmatpush1.bf16.msra.mxu0 0
    %1600 = vmatprep.subr.bf16.mxu0 0
    %1601 = vmatpush1.bf16.msra.mxu0 0
    %1602 = vmatprep.subr.bf16.mxu0 0
    %1603 = vmatpush1.bf16.msra.mxu0 %v1583
    %1604 = vmatprep.subr.bf16.mxu0 0
    %1605 = vmatpush2.bf16.msra.mxu0 0
    %1606 = vmatprep.subr.bf16.mxu0 0
    %1607 = vmatpush2.bf16.msra.mxu0 0
    %1608 = vmatprep.subr.bf16.mxu0 0
    %1609 = vmatpush2.bf16.msra.mxu0 0
    %1610 = vmatprep.subr.bf16.mxu0 0
    %1611 = vmatpush2.bf16.msra.mxu0 0
    %1612 = vmatprep.subr.bf16.mxu0 0
    %1613 = vmatpush2.bf16.msra.mxu0 0
    %1614 = vmatprep.subr.bf16.mxu0 0
    %1615 = vmatpush2.bf16.msra.mxu0 0
    %1616 = vmatprep.subr.bf16.mxu0 0
    %1617 = vmatpush2.bf16.msra.mxu0 0
    %1618 = vmatprep.subr.bf16.mxu0 0
    %1619 = vmatpush2.bf16.msra.mxu0 0
    %1620 = vmatprep.mubr.bf16.mxu0 0
    %1621 = vmatmul.mubr.bf16.gmra.mxu0 %v1586
    %v1622 = vpop.f32.mrf.mxu0
    %v1623 = vadd.f32 %v1577, %v1622
    %v1624 = vpop.f32.mrf.mxu0
    %v1625 = vpop.f32.mrf.mxu0
    %v1626 = vpop.f32.mrf.mxu0
    %1627 = vdwg.mxu0
    %v1628 = vmax.f32 %v1623, 0.0
    %v1629 = vpack.c.bf16 %v1628, %v1628
    %v1631 = vsel %vm801, %v1629, 0
    %1633 = vmatprep.subr.bf16.mxu0 0
    %1634 = vmatpush1.bf16.msra.mxu0 0
    %1635 = vmatprep.subr.bf16.mxu0 0
    %1636 = vmatpush1.bf16.msra.mxu0 0
    %1637 = vmatprep.subr.bf16.mxu0 0
    %1638 = vmatpush1.bf16.msra.mxu0 0
    %1639 = vmatprep.subr.bf16.mxu0 0
    %1640 = vmatpush1.bf16.msra.mxu0 0
    %1641 = vmatprep.subr.bf16.mxu0 0
    %1642 = vmatpush1.bf16.msra.mxu0 0
    %1643 = vmatprep.subr.bf16.mxu0 0
    %1644 = vmatpush1.bf16.msra.mxu0 0
    %1645 = vmatprep.subr.bf16.mxu0 0
    %1646 = vmatpush1.bf16.msra.mxu0 0
    %1647 = vmatprep.subr.bf16.mxu0 0
    %1648 = vmatpush1.bf16.msra.mxu0 %v1583
    %1649 = vmatprep.subr.bf16.mxu0 0
    %1650 = vmatpush2.bf16.msra.mxu0 0
    %1651 = vmatprep.subr.bf16.mxu0 0
    %1652 = vmatpush2.bf16.msra.mxu0 0
    %1653 = vmatprep.subr.bf16.mxu0 0
    %1654 = vmatpush2.bf16.msra.mxu0 0
    %1655 = vmatprep.subr.bf16.mxu0 0
    %1656 = vmatpush2.bf16.msra.mxu0 0
    %1657 = vmatprep.subr.bf16.mxu0 0
    %1658 = vmatpush2.bf16.msra.mxu0 0
    %1659 = vmatprep.subr.bf16.mxu0 0
    %1660 = vmatpush2.bf16.msra.mxu0 0
    %1661 = vmatprep.subr.bf16.mxu0 0
    %1662 = vmatpush2.bf16.msra.mxu0 0
    %1663 = vmatprep.subr.bf16.mxu0 0
    %1664 = vmatpush2.bf16.msra.mxu0 0
    %1665 = vmatprep.mubr.bf16.mxu0 0
    %1666 = vmatmul.mubr.bf16.gmra.mxu0 %v1631
    %v1667 = vpop.f32.mrf.mxu0
    %v1668 = vadd.f32 %v1577, %v1667
    %v1669 = vpop.f32.mrf.mxu0
    %v1670 = vpop.f32.mrf.mxu0
    %v1671 = vpop.f32.mrf.mxu0
    %1672 = vdwg.mxu0
    %v1673 = vmax.f32 %v1668, 0.0
    %v1674 = vpack.c.bf16 %v1673, %v1673
    %v1675 = vld [vmem:[%s22] sm:$0xf]
    %v1676 = vld [vmem:[%s22 + $0x4] sm:$0xf]
    %v1677 = vld [vmem:[#allocation2] sm:$0x1]
    %v1679 = vlaneseq
    %v1680 = vshrl.u32 %v1679, 7
    %v1681 = vsub.s32 0, %v1680
    %v1682 = vrot.slane %v1677, %v1681
    %v1686 = vunpack.c.l.b16 %v1675
    %v1687 = vunpack.c.l.b16 %v1676
    %v1688 = vpack.c.b16 %v1687, %v1686
    %v1691 = vsel %vm801, %v1674, 0
    %1693 = vmatprep.subr.bf16.mxu0 0
    %1694 = vmatpush1.bf16.msra.mxu0 0
    %1695 = vmatprep.subr.bf16.mxu0 0
    %1696 = vmatpush1.bf16.msra.mxu0 0
    %1697 = vmatprep.subr.bf16.mxu0 0
    %1698 = vmatpush1.bf16.msra.mxu0 0
    %1699 = vmatprep.subr.bf16.mxu0 0
    %1700 = vmatpush1.bf16.msra.mxu0 0
    %1701 = vmatprep.subr.bf16.mxu0 0
    %1702 = vmatpush1.bf16.msra.mxu0 0
    %1703 = vmatprep.subr.bf16.mxu0 0
    %1704 = vmatpush1.bf16.msra.mxu0 0
    %1705 = vmatprep.subr.bf16.mxu0 0
    %1706 = vmatpush1.bf16.msra.mxu0 0
    %1707 = vmatprep.subr.bf16.mxu0 0
    %1708 = vmatpush1.bf16.msra.mxu0 %v1688
    %1709 = vmatprep.subr.bf16.mxu0 0
    %1710 = vmatpush2.bf16.msra.mxu0 0
    %1711 = vmatprep.subr.bf16.mxu0 0
    %1712 = vmatpush2.bf16.msra.mxu0 0
    %1713 = vmatprep.subr.bf16.mxu0 0
    %1714 = vmatpush2.bf16.msra.mxu0 0
    %1715 = vmatprep.subr.bf16.mxu0 0
    %1716 = vmatpush2.bf16.msra.mxu0 0
    %1717 = vmatprep.subr.bf16.mxu0 0
    %1718 = vmatpush2.bf16.msra.mxu0 0
    %1719 = vmatprep.subr.bf16.mxu0 0
    %1720 = vmatpush2.bf16.msra.mxu0 0
    %1721 = vmatprep.subr.bf16.mxu0 0
    %1722 = vmatpush2.bf16.msra.mxu0 0
    %1723 = vmatprep.subr.bf16.mxu0 0
    %1724 = vmatpush2.bf16.msra.mxu0 0
    %1725 = vmatprep.mubr.bf16.mxu0 0
    %1726 = vmatmul.mubr.bf16.gmra.mxu0 %v1691
    %v1727 = vpop.f32.mrf.mxu0
    %v1728 = vadd.f32 %v1682, %v1727
    %v1729 = vpop.f32.mrf.mxu0
    %v1730 = vpop.f32.mrf.mxu0
    %v1731 = vpop.f32.mrf.mxu0
    %1732 = vdwg.mxu0
    %v1733 = vxor.u32 %v1728, 2147483648
    %v1734 = vmul.f32 %v1733, 1.442695
    %v1735 = vpow.pop %v1734
    %v1736 = vadd.f32 %v1735, 1.0
    %v1737 = vrcp.pop %v1736
    %v1738 = vmul.f32 1.0, %v1737
    %1740 = vset.pattern.permute.xlu0 0
    %1741 = vperm.xlu0 %1740, %v1738
    %v1742 = vpop.permute.xlu0 %1741
    %1744 = vst [vmem:[#allocation3] sm:$0xff] %v1742
    // Predicated region
    $region98: #{tpu_custom_call.1} parent=1 // pred_check
      _
    $region99: #{tpu_custom_call.1} parent=1 // pred_check_branch
      %1746 = sbr.rel (0) target = $region101
    $region100: #{tpu_custom_call.1} parent=1 // pred_region
      %s1748 = ssub.s32 128, 128
      %1749 = vsyncadd [#allocation4], %s1748
      %s1751 = sshll.u32 [#allocation3], 4
      %s1752 = int_to_ptr.vmem [resolvable:$true] %s1751
      %1754 = dma.vmem_to_hbm [thread:$0]  %s1752, 128, %s24, [#allocation4]
    $region101: #{tpu_custom_call.1} parent=1 // pred_fallthru
      _
    // Predicated region
    $region102: #{tpu_custom_call.1} parent=1 // pred_check
      _
    $region103: #{tpu_custom_call.1} parent=1 // pred_check_branch
      %1756 = sbr.rel (0) target = $region105
    $region104: #{tpu_custom_call.1} parent=1 // pred_region
      %1757 = dma.done [#allocation4], 128
    $region105: #{tpu_custom_call.1} parent=1 // pred_fallthru
      _
    %1758 = vsyncpa [#allocation4], 1

</llo_original>
